<compile_context>
chip_gen: v7x
topology: tpu7x:2x2x1
jax: 0.10.0
libtpu: 0.0.40
codegen_flags: <defaults>
</compile_context>

<pallas_src>
import functools

import jax
import jax.numpy as jnp
from jax import lax
from jax.experimental import pallas as pl
from jax.experimental.pallas import tpu as pltpu


def _mha_kernel(q_ref, k_ref, v_ref,
                wq_ref, bq_ref, wk_ref, bk_ref,
                wv_ref, bv_ref, wo_ref, bo_ref,
                *rest,
                group_size, head_dim, inv_heads, need_weights, cache_kv):
    """One grid step = (batch b, query-tile i, head-group hg).

    Block shapes seen by the kernel (squeezed leading dims removed):
      q_ref: (Tq, E)   k_ref/v_ref: (Sk, E)
      wq/wk/wv_ref: (E, G*Dh)   bq/bk/bv_ref: (1, G*Dh)
      wo_ref: (G*Dh, E)   bo_ref: (1, E)
      out_ref: (Tq, E)   attn_ref: (Tq, Sk) f32 (optional)
      acc_ref: (Tq, E) f32 scratch
      kh/vh cache: (H//G, Sk, G*Dh) scratch in the compute dtype (optional)
    """
    # --- unpack outputs and scratch refs -------------------------------------
    idx = 0
    out_ref = rest[idx]; idx += 1
    attn_ref = None
    if need_weights:
        attn_ref = rest[idx]; idx += 1
    acc_ref = rest[idx]; idx += 1
    if cache_kv:
        kh_ref = rest[idx]
        vh_ref = rest[idx + 1]
        idx += 2

    i = pl.program_id(1)
    hg = pl.program_id(2)
    n_hg = pl.num_programs(2)
    G, Dh = group_size, head_dim
    cdt = q_ref.dtype          # model/compute dtype fed to the MXU

    # Q projection for this head group.  1/sqrt(Dh) is already folded into
    # wq/bq on the host, so no per-score scaling is needed below.
    Qg = (jnp.dot(q_ref[...], wq_ref[...], preferred_element_type=jnp.float32)
          + bq_ref[...].astype(jnp.float32)).astype(cdt)               # (Tq, G*Dh)

    def project_kv():
        Kg = (jnp.dot(k_ref[...], wk_ref[...], preferred_element_type=jnp.float32)
              + bk_ref[...].astype(jnp.float32)).astype(cdt)           # (Sk, G*Dh)
        Vg = (jnp.dot(v_ref[...], wv_ref[...], preferred_element_type=jnp.float32)
              + bv_ref[...].astype(jnp.float32)).astype(cdt)           # (Sk, G*Dh)
        return Kg, Vg

    if cache_kv:
        # K/V head projections are independent of the query-tile axis: compute
        # them once (first query tile of every batch) and reuse afterwards.
        @pl.when(i == 0)
        def _():
            Kg0, Vg0 = project_kv()
            kh_ref[hg] = Kg0
            vh_ref[hg] = Vg0
        Kg = kh_ref[hg]
        Vg = vh_ref[hg]
    else:
        Kg, Vg = project_kv()

    @pl.when(hg == 0)
    def _():
        acc_ref[...] = jnp.zeros_like(acc_ref)
        if need_weights:
            attn_ref[...] = jnp.zeros_like(attn_ref)

    # Per-head scores / softmax / context inside the group (unrolled Python
    # loop; G is a small static int).  Contraction over Dh is expressed with a
    # transposed-RHS dot_general feed (no explicit K transpose).
    dim_nums = (((1,), (1,)), ((), ()))      # (q,d) x (k,d) -> (q,k)
    attn_sum = None
    ctx_parts = []
    for g in range(G):
        lo = g * Dh
        Qh = Qg[:, lo:lo + Dh]
        Kh = Kg[:, lo:lo + Dh]
        Vh = Vg[:, lo:lo + Dh]
        scores = lax.dot_general(Qh, Kh, dim_nums,
                                 preferred_element_type=jnp.float32)   # (Tq, Sk)
        m = jnp.max(scores, axis=-1, keepdims=True)
        e = jnp.exp(scores - m)
        denom = jnp.sum(e, axis=-1, keepdims=True)
        # Exact reciprocal: the attention weights are returned to the caller.
        w = e * pl.reciprocal(denom, approx=False)                      # (Tq, Sk)
        # TODO(synk): dropout on `w` omitted (inference / eval mode).
        if need_weights:
            attn_sum = w if attn_sum is None else attn_sum + w
        ctx_parts.append(jnp.dot(w.astype(cdt), Vh,
                                 preferred_element_type=jnp.float32).astype(cdt))

    ctx = ctx_parts[0] if G == 1 else jnp.concatenate(ctx_parts, axis=-1)  # (Tq, G*Dh)

    # out = concat_h(ctx_h) @ Wo^T = sum_groups ctx_group @ Wo_group
    acc_ref[...] += jnp.dot(ctx, wo_ref[...], preferred_element_type=jnp.float32)
    if need_weights:
        attn_ref[...] += attn_sum

    @pl.when(hg == n_hg - 1)
    def _():
        out_ref[...] = (acc_ref[...]
                        + bo_ref[...].astype(jnp.float32)).astype(out_ref.dtype)
        if need_weights:
            # Deferred mean over heads: one VPU pass instead of H passes.
            attn_ref[...] = attn_ref[...] * inv_heads


def _vmem_capacity_bytes():
    try:
        cap = getattr(pltpu.get_tpu_info(), "vmem_capacity_bytes", None)
        if cap:
            return int(cap)
    except Exception:
        pass
    return 64 * 1024 * 1024       # conservative (v7x per-core size)


def _choose_head_group(num_heads, head_dim):
    """Pick G heads per grid step so projection matmuls get a lane-full
    (multiple-of-128) N dimension; prefer G*Dh == 256 for v6e/v7x's MXU."""
    candidates = [g for g in range(1, num_heads + 1)
                  if num_heads % g == 0
                  and (g * head_dim) % 128 == 0
                  and g * head_dim <= 512]
    if not candidates:
        return 1
    for g in candidates:                     # ascending
        if g * head_dim >= 256:
            return g
    return candidates[-1]


def _choose_query_tile(seq_q, seq_k, vmem_cap, override=None):
    if override is not None:
        assert seq_q % override == 0
        return override
    for t in (1024, 512, 256, 128):
        if seq_q % t != 0:
            continue
        # Keep the double-buffered f32 attention block a modest VMEM fraction.
        if 2 * t * seq_k * 4 <= vmem_cap // 4:
            return t
    return seq_q                              # short sequences: one full tile


def multi_head_attention(query, key, value, params, *, num_heads,
                         need_weights=True, query_tile=None):
    """Pallas multi-head attention forward pass.

    query: (B, Sq, E), key/value: (B, Sk, E).  `params` holds torch-layout
    Linear weights (out, in) and biases (out,).
    Returns (output (B, Sq, E),
             attention weights averaged over heads (B, Sq, Sk) or None).
    """
    B, Sq, E = query.shape
    Sk = key.shape[1]
    assert E % num_heads == 0
    H = num_heads
    Dh = E // H
    inv_scale = 1.0 / (float(Dh) ** 0.5)
    inv_heads = 1.0 / float(H)

    G = _choose_head_group(H, Dh)
    GDh = G * Dh
    NG = H // G

    # ---- Host-side (free) weight re-layout: torch (out, in) -> per-group
    #      (in, out) blocks; heads within a group stay in torch order.
    def split_heads(w):            # (H*Dh, E_in) -> (NG, E_in, G*Dh)
        return jnp.transpose(w.reshape(NG, GDh, E), (0, 2, 1))

    wq3 = split_heads(params["wq"] * inv_scale)            # fold 1/sqrt(Dh)
    bq3 = (params["bq"] * inv_scale).reshape(NG, 1, GDh)
    wk3 = split_heads(params["wk"])
    bk3 = params["bk"].reshape(NG, 1, GDh)
    wv3 = split_heads(params["wv"])
    bv3 = params["bv"].reshape(NG, 1, GDh)
    wo3 = jnp.transpose(params["wo"]).reshape(NG, GDh, E)  # (NG, G*Dh, E_out)
    bo2 = params["bo"].reshape(1, E)

    isz = query.dtype.itemsize
    wsz = wq3.dtype.itemsize
    vmem_cap = _vmem_capacity_bytes()

    Tq = _choose_query_tile(Sq, Sk, vmem_cap, query_tile)
    n_q_tiles = Sq // Tq
    grid = (B, n_q_tiles, NG)

    # Cache K/V head projections across query tiles when it pays off and fits.
    kv_cache_bytes = 2 * Sk * E * isz
    cache_kv = (n_q_tiles > 1) and (kv_cache_bytes <= vmem_cap // 4)

    # ---- BlockSpecs ----------------------------------------------------------
    sq_spec = pl.BlockSpec((pl.Squeezed(), Tq, E), lambda b, i, h: (b, i, 0))
    # K/V block index only changes with the batch axis; drop to single
    # buffering when double-buffered residency would dominate VMEM (v7x / long Sk).
    kv_kwargs = {}
    if 2 * 2 * Sk * E * isz > vmem_cap // 4:
        kv_kwargs["pipeline_mode"] = pl.Buffered(1)
    kv_spec = pl.BlockSpec((pl.Squeezed(), Sk, E), lambda b, i, h: (b, 0, 0),
                           **kv_kwargs)
    wqkv_spec = pl.BlockSpec((pl.Squeezed(), E, GDh), lambda b, i, h: (h, 0, 0))
    bqkv_spec = pl.BlockSpec((pl.Squeezed(), 1, GDh), lambda b, i, h: (h, 0, 0))
    wo_spec = pl.BlockSpec((pl.Squeezed(), GDh, E), lambda b, i, h: (h, 0, 0))
    bo_spec = pl.BlockSpec((1, E), lambda b, i, h: (0, 0))

    out_spec = pl.BlockSpec((pl.Squeezed(), Tq, E), lambda b, i, h: (b, i, 0))
    out_shapes = [jax.ShapeDtypeStruct((B, Sq, E), query.dtype)]
    out_specs = [out_spec]
    if need_weights:
        out_shapes.append(jax.ShapeDtypeStruct((B, Sq, Sk), jnp.float32))
        out_specs.append(pl.BlockSpec((pl.Squeezed(), Tq, Sk),
                                      lambda b, i, h: (b, i, 0)))

    scratch_shapes = [pltpu.VMEM((Tq, E), jnp.float32)]
    if cache_kv:
        scratch_shapes += [pltpu.VMEM((NG, Sk, GDh), query.dtype),
                           pltpu.VMEM((NG, Sk, GDh), query.dtype)]

    # ---- Advisory cost estimate ---------------------------------------------
    flops = 2 * B * (Sq * E * E + 2 * Sk * E * E + 2 * Sq * Sk * E + Sq * E * E)
    transcendentals = B * H * Sq * Sk
    bytes_accessed = ((B * Sq * E + 2 * B * Sk * E) * isz          # q, k, v
                      + 4 * E * E * wsz + 4 * E * wsz              # weights/biases
                      + B * Sq * E * isz                           # output
                      + (B * Sq * Sk * 4 if need_weights else 0))  # attn weights
    cost = pl.CostEstimate(flops=int(flops),
                           transcendentals=int(transcendentals),
                           bytes_accessed=int(bytes_accessed))

    # ---- VMEM budget (derived from the chip's capacity, with headroom) ------
    block_bytes = (
        2 * (Tq * E + 2 * Sk * E) * isz                               # q/k/v
        + 2 * (3 * E * GDh + 3 * GDh + GDh * E + E) * wsz             # weights
        + 2 * (Tq * E * isz + (Tq * Sk * 4 if need_weights else 0))   # outputs
        + Tq * E * 4                                                  # f32 acc
        + (2 * NG * Sk * GDh * isz if cache_kv else 0)                # K/V cache
        + (G + 4) * Tq * Sk * 4)                                      # temps
    vmem_limit = int(min(max(2 * block_bytes, 32 * 1024 * 1024),
                         (vmem_cap * 7) // 8))

    # When the K/V projection cache is used, the query-tile axis must iterate
    # sequentially from 0 on each core; keep the batch axis parallel.
    dim_sem = ("parallel",
               "arbitrary" if cache_kv else "parallel",
               "arbitrary")

    kernel = functools.partial(_mha_kernel,
                               group_size=G, head_dim=Dh, inv_heads=inv_heads,
                               need_weights=need_weights, cache_kv=cache_kv)

    results = pl.pallas_call(
        kernel,
        out_shape=tuple(out_shapes),
        grid_spec=pltpu.PrefetchScalarGridSpec(
            num_scalar_prefetch=0,
            grid=grid,
            in_specs=[
                sq_spec, kv_spec, kv_spec,        # q, k, v
                wqkv_spec, bqkv_spec,             # Wq_g, bq_g (pre-scaled)
                wqkv_spec, bqkv_spec,             # Wk_g, bk_g
                wqkv_spec, bqkv_spec,             # Wv_g, bv_g
                wo_spec, bo_spec,                 # Wo_g, bo
            ],
            out_specs=tuple(out_specs),
            scratch_shapes=scratch_shapes),
        compiler_params=pltpu.CompilerParams(
            dimension_semantics=dim_sem,
            vmem_limit_bytes=vmem_limit),
        cost_estimate=cost,
    )(query, key, value, wq3, bq3, wk3, bk3, wv3, bv3, wo3, bo2)

    if need_weights:
        return results[0], results[1]
    return results[0], None


def _reference_mha(query, key, value, params, *, num_heads):
    """Pure-JAX reference matching the PyTorch module (eval mode, mask=None)."""
    B, Sq, E = query.shape
    Sk = key.shape[1]
    Dh = E // num_heads
    scale = jnp.sqrt(jnp.float32(Dh))

    def lin(x, w, b):
        return x @ w.T + b

    Q = lin(query, params["wq"], params["bq"])
    K = lin(key, params["wk"], params["bk"])
    V = lin(value, params["wv"], params["bv"])

    Q = Q.reshape(B, Sq, num_heads, Dh).transpose(0, 2, 1, 3)
    K = K.reshape(B, Sk, num_heads, Dh).transpose(0, 2, 1, 3)
    V = V.reshape(B, Sk, num_heads, Dh).transpose(0, 2, 1, 3)

    scores = jnp.einsum("bhqd,bhkd->bhqk", Q, K) / scale
    w = jax.nn.softmax(scores, axis=-1)
    ctx = jnp.einsum("bhqk,bhkd->bhqd", w, V)
    ctx = ctx.transpose(0, 2, 1, 3).reshape(B, Sq, E)
    out = lin(ctx, params["wo"], params["bo"])
    return out, w.mean(axis=1)


if __name__ == "__main__":
    def init_linear(k, fan_in, fan_out):
        bound = 1.0 / (fan_in ** 0.5)
        kw, kb = jax.random.split(k)
        w = jax.random.uniform(kw, (fan_out, fan_in), jnp.float32, -bound, bound)
        b = jax.random.uniform(kb, (fan_out,), jnp.float32, -bound, bound)
        return w, b

    def make_case(key0, batch, seq_q, seq_k, embed_dim):
        ks = jax.random.split(key0, 7)
        wq, bq = init_linear(ks[0], embed_dim, embed_dim)
        wk, bk = init_linear(ks[1], embed_dim, embed_dim)
        wv, bv = init_linear(ks[2], embed_dim, embed_dim)
        wo, bo = init_linear(ks[3], embed_dim, embed_dim)
        params = dict(wq=wq, bq=bq, wk=wk, bk=bk, wv=wv, bv=bv, wo=wo, bo=bo)
        q = jax.random.normal(ks[4], (batch, seq_q, embed_dim), jnp.float32)
        k = jax.random.normal(ks[5], (batch, seq_k, embed_dim), jnp.float32)
        v = jax.random.normal(ks[6], (batch, seq_k, embed_dim), jnp.float32)
        return q, k, v, params

    root = jax.random.PRNGKey(0)
    k1, k2 = jax.random.split(root)

    # Case 1: small shapes consistent with the module (B=2, S=8, E=32, H=4).
    q, k, v, params = make_case(k1, batch=2, seq_q=8, seq_k=8, embed_dim=32)
    out, attn = multi_head_attention(q, k, v, params, num_heads=4)
    out = jax.block_until_ready(out)
    attn = jax.block_until_ready(attn)
    ref_out, ref_attn = _reference_mha(q, k, v, params, num_heads=4)
    assert out.shape == (2, 8, 32) and attn.shape == (2, 8, 8)
    assert jnp.allclose(out, ref_out, atol=2e-3, rtol=2e-3)
    assert jnp.allclose(attn, ref_attn, atol=2e-3, rtol=2e-3)

    # Case 2: exercises head grouping (Dh=64 -> G*Dh=256) and the cached K/V
    # head projections across query tiles (Sq // Tq = 2 with query_tile=128).
    q, k, v, params = make_case(k2, batch=1, seq_q=256, seq_k=256, embed_dim=256)
    out, attn = multi_head_attention(q, k, v, params, num_heads=4,
                                     query_tile=128)
    out = jax.block_until_ready(out)
    attn = jax.block_until_ready(attn)
    ref_out, ref_attn = _reference_mha(q, k, v, params, num_heads=4)
    assert out.shape == (1, 256, 256) and attn.shape == (1, 256, 256)
    assert jnp.allclose(out, ref_out, atol=2e-2, rtol=2e-2)
    assert jnp.allclose(attn, ref_attn, atol=2e-2, rtol=2e-2)

    # Case 2b: output-only path (skips the attention-weights writeback).
    out_only, none_attn = multi_head_attention(q, k, v, params, num_heads=4,
                                               query_tile=128,
                                               need_weights=False)
    out_only = jax.block_until_ready(out_only)
    assert none_attn is None
    assert jnp.allclose(out_only, ref_out, atol=2e-2, rtol=2e-2)

    print("KERNEL_OK")
</pallas_src>

<mosaic_0001>
module attributes {stable_mosaic.version = 11 : i64} {
  func.func @_mha_kernel(%arg0: i32, %arg1: i32, %arg2: i32, %arg3: memref<1x8x32xf32, #tpu.memory_space<vmem>>, %arg4: memref<1x8x32xf32, #tpu.memory_space<vmem>>, %arg5: memref<1x8x32xf32, #tpu.memory_space<vmem>>, %arg6: memref<1x32x8xf32, #tpu.memory_space<vmem>>, %arg7: memref<1x1x8xf32, #tpu.memory_space<vmem>>, %arg8: memref<1x32x8xf32, #tpu.memory_space<vmem>>, %arg9: memref<1x1x8xf32, #tpu.memory_space<vmem>>, %arg10: memref<1x32x8xf32, #tpu.memory_space<vmem>>, %arg11: memref<1x1x8xf32, #tpu.memory_space<vmem>>, %arg12: memref<1x8x32xf32, #tpu.memory_space<vmem>>, %arg13: memref<1x32xf32, #tpu.memory_space<vmem>>, %arg14: memref<1x8x32xf32, #tpu.memory_space<vmem>>, %arg15: memref<1x8x8xf32, #tpu.memory_space<vmem>>, %arg16: memref<8x32xf32, #tpu.memory_space<vmem>>) attributes {dimension_semantics = [#tpu.dimension_semantics<parallel>, #tpu.dimension_semantics<parallel>, #tpu.dimension_semantics<arbitrary>], iteration_bounds = array<i64: 2, 1, 4>, scalar_prefetch = 0 : i64, scratch_operands = 1 : i64, tpu.core_type = #tpu.core_type<tc>, window_params = [{transform_indices = @transform_0, window_bounds = array<i64: 1, 8, 32>}, {transform_indices = @transform_1, window_bounds = array<i64: 1, 8, 32>}, {transform_indices = @transform_2, window_bounds = array<i64: 1, 8, 32>}, {transform_indices = @transform_3, window_bounds = array<i64: 1, 32, 8>}, {transform_indices = @transform_4, window_bounds = array<i64: 1, 1, 8>}, {transform_indices = @transform_5, window_bounds = array<i64: 1, 32, 8>}, {transform_indices = @transform_6, window_bounds = array<i64: 1, 1, 8>}, {transform_indices = @transform_7, window_bounds = array<i64: 1, 32, 8>}, {transform_indices = @transform_8, window_bounds = array<i64: 1, 1, 8>}, {transform_indices = @transform_9, window_bounds = array<i64: 1, 8, 32>}, {pipeline_mode = #tpu.pipeline_mode<synchronous>, transform_indices = @transform_10, window_bounds = array<i64: 1, 32>}, {transform_indices = @transform_11, window_bounds = array<i64: 1, 8, 32>}, {transform_indices = @transform_12, window_bounds = array<i64: 1, 8, 8>}]} {
    %c0 = arith.constant 0 : index
    %c0_0 = arith.constant 0 : index
    %c0_1 = arith.constant 0 : index
    %0 = vector.load %arg3[%c0, %c0_0, %c0_1] : memref<1x8x32xf32, #tpu.memory_space<vmem>>, vector<1x8x32xf32>
    %1 = vector.shape_cast %0 : vector<1x8x32xf32> to vector<8x32xf32>
    %c0_2 = arith.constant 0 : index
    %c0_3 = arith.constant 0 : index
    %c0_4 = arith.constant 0 : index
    %2 = vector.load %arg6[%c0_2, %c0_3, %c0_4] : memref<1x32x8xf32, #tpu.memory_space<vmem>>, vector<1x32x8xf32>
    %3 = vector.shape_cast %2 : vector<1x32x8xf32> to vector<32x8xf32>
    %cst = arith.constant dense<0.000000e+00> : vector<8x8xf32>
    %4 = tpu.matmul %1, %3, %cst {dimension_numbers = #tpu.dot_dimension_numbers<[1], [0], [0], [1], [0, 0, 1, 1], [], []>} : vector<8x32xf32>, vector<32x8xf32>, vector<8x8xf32> -> vector<8x8xf32>
    %c0_5 = arith.constant 0 : index
    %c0_6 = arith.constant 0 : index
    %c0_7 = arith.constant 0 : index
    %5 = vector.load %arg7[%c0_5, %c0_6, %c0_7] : memref<1x1x8xf32, #tpu.memory_space<vmem>>, vector<1x1x8xf32>
    %6 = vector.shape_cast %5 : vector<1x1x8xf32> to vector<1x8xf32>
    %7 = vector.broadcast %6 : vector<1x8xf32> to vector<8x8xf32>
    %8 = arith.addf %4, %7 : vector<8x8xf32>
    %c0_8 = arith.constant 0 : index
    %c0_9 = arith.constant 0 : index
    %c0_10 = arith.constant 0 : index
    %9 = vector.load %arg4[%c0_8, %c0_9, %c0_10] : memref<1x8x32xf32, #tpu.memory_space<vmem>>, vector<1x8x32xf32>
    %10 = vector.shape_cast %9 : vector<1x8x32xf32> to vector<8x32xf32>
    %c0_11 = arith.constant 0 : index
    %c0_12 = arith.constant 0 : index
    %c0_13 = arith.constant 0 : index
    %11 = vector.load %arg8[%c0_11, %c0_12, %c0_13] : memref<1x32x8xf32, #tpu.memory_space<vmem>>, vector<1x32x8xf32>
    %12 = vector.shape_cast %11 : vector<1x32x8xf32> to vector<32x8xf32>
    %cst_14 = arith.constant dense<0.000000e+00> : vector<8x8xf32>
    %13 = tpu.matmul %10, %12, %cst_14 {dimension_numbers = #tpu.dot_dimension_numbers<[1], [0], [0], [1], [0, 0, 1, 1], [], []>} : vector<8x32xf32>, vector<32x8xf32>, vector<8x8xf32> -> vector<8x8xf32>
    %c0_15 = arith.constant 0 : index
    %c0_16 = arith.constant 0 : index
    %c0_17 = arith.constant 0 : index
    %14 = vector.load %arg9[%c0_15, %c0_16, %c0_17] : memref<1x1x8xf32, #tpu.memory_space<vmem>>, vector<1x1x8xf32>
    %15 = vector.shape_cast %14 : vector<1x1x8xf32> to vector<1x8xf32>
    %16 = vector.broadcast %15 : vector<1x8xf32> to vector<8x8xf32>
    %17 = arith.addf %13, %16 : vector<8x8xf32>
    %c0_18 = arith.constant 0 : index
    %c0_19 = arith.constant 0 : index
    %c0_20 = arith.constant 0 : index
    %18 = vector.load %arg5[%c0_18, %c0_19, %c0_20] : memref<1x8x32xf32, #tpu.memory_space<vmem>>, vector<1x8x32xf32>
    %19 = vector.shape_cast %18 : vector<1x8x32xf32> to vector<8x32xf32>
    %c0_21 = arith.constant 0 : index
    %c0_22 = arith.constant 0 : index
    %c0_23 = arith.constant 0 : index
    %20 = vector.load %arg10[%c0_21, %c0_22, %c0_23] : memref<1x32x8xf32, #tpu.memory_space<vmem>>, vector<1x32x8xf32>
    %21 = vector.shape_cast %20 : vector<1x32x8xf32> to vector<32x8xf32>
    %cst_24 = arith.constant dense<0.000000e+00> : vector<8x8xf32>
    %22 = tpu.matmul %19, %21, %cst_24 {dimension_numbers = #tpu.dot_dimension_numbers<[1], [0], [0], [1], [0, 0, 1, 1], [], []>} : vector<8x32xf32>, vector<32x8xf32>, vector<8x8xf32> -> vector<8x8xf32>
    %c0_25 = arith.constant 0 : index
    %c0_26 = arith.constant 0 : index
    %c0_27 = arith.constant 0 : index
    %23 = vector.load %arg11[%c0_25, %c0_26, %c0_27] : memref<1x1x8xf32, #tpu.memory_space<vmem>>, vector<1x1x8xf32>
    %24 = vector.shape_cast %23 : vector<1x1x8xf32> to vector<1x8xf32>
    %25 = vector.broadcast %24 : vector<1x8xf32> to vector<8x8xf32>
    %26 = arith.addf %22, %25 : vector<8x8xf32>
    %c0_i32 = arith.constant 0 : i32
    %27 = arith.cmpi eq, %arg2, %c0_i32 : i32
    %28 = arith.extui %27 : i1 to i32
    %c0_i32_28 = arith.constant 0 : i32
    %29 = arith.cmpi ne, %28, %c0_i32_28 : i32
    scf.if %29 {
      %cst_48 = arith.constant 0.000000e+00 : f32
      %57 = vector.broadcast %cst_48 : f32 to vector<8x32xf32>
      %c0_49 = arith.constant 0 : index
      %c0_50 = arith.constant 0 : index
      %58 = vector.load %arg16[%c0_49, %c0_50] : memref<8x32xf32, #tpu.memory_space<vmem>>, vector<8x32xf32>
      tpu.vector_store %arg16[%c0_49, %c0_50], %57 {strides = array<i32>} : memref<8x32xf32, #tpu.memory_space<vmem>>, vector<8x32xf32>,
      %cst_51 = arith.constant 0.000000e+00 : f32
      %59 = vector.broadcast %cst_51 : f32 to vector<8x8xf32>
      %c0_52 = arith.constant 0 : index
      %c0_53 = arith.constant 0 : index
      %c0_54 = arith.constant 0 : index
      %60 = vector.load %arg15[%c0_52, %c0_53, %c0_54] : memref<1x8x8xf32, #tpu.memory_space<vmem>>, vector<1x8x8xf32>
      %61 = vector.shape_cast %60 : vector<1x8x8xf32> to vector<8x8xf32>
      %62 = vector.shape_cast %59 : vector<8x8xf32> to vector<1x8x8xf32>
      tpu.vector_store %arg15[%c0_52, %c0_53, %c0_54], %62 {strides = array<i32>} : memref<1x8x8xf32, #tpu.memory_space<vmem>>, vector<1x8x8xf32>,
    } else {
    }
    %cst_29 = arith.constant dense<0.000000e+00> : vector<8x8xf32>
    %30 = tpu.matmul %8, %17, %cst_29 {dimension_numbers = #tpu.dot_dimension_numbers<[1], [1], [0], [0], [0, 0, 1, 0], [], []>} : vector<8x8xf32>, vector<8x8xf32>, vector<8x8xf32> -> vector<8x8xf32>
    %cst_30 = arith.constant dense<0xFF800000> : vector<8xf32>
    %31 = vector.multi_reduction <maximumf>, %30, %cst_30 [1] : vector<8x8xf32> to vector<8xf32>
    %32 = vector.shape_cast %31 : vector<8xf32> to vector<8x1xf32>
    %33 = vector.broadcast %32 : vector<8x1xf32> to vector<8x8xf32>
    %34 = arith.subf %30, %33 : vector<8x8xf32>
    %35 = math.exp %34 : vector<8x8xf32>
    %cst_31 = arith.constant dense<0.000000e+00> : vector<8xf32>
    %36 = vector.multi_reduction <add>, %35, %cst_31 [1] : vector<8x8xf32> to vector<8xf32>
    %37 = vector.shape_cast %36 : vector<8xf32> to vector<8x1xf32>
    %38 = tpu.reciprocal %37 : vector<8x1xf32> -> vector<8x1xf32>
    %39 = vector.broadcast %38 : vector<8x1xf32> to vector<8x8xf32>
    %40 = arith.mulf %35, %39 : vector<8x8xf32>
    %cst_32 = arith.constant dense<0.000000e+00> : vector<8x8xf32>
    %41 = tpu.matmul %40, %26, %cst_32 {dimension_numbers = #tpu.dot_dimension_numbers<[1], [0], [0], [1], [0, 0, 1, 1], [], []>} : vector<8x8xf32>, vector<8x8xf32>, vector<8x8xf32> -> vector<8x8xf32>
    %c0_33 = arith.constant 0 : index
    %c0_34 = arith.constant 0 : index
    %42 = vector.load %arg16[%c0_33, %c0_34] : memref<8x32xf32, #tpu.memory_space<vmem>>, vector<8x32xf32>
    %c0_35 = arith.constant 0 : index
    %c0_36 = arith.constant 0 : index
    %c0_37 = arith.constant 0 : index
    %43 = vector.load %arg12[%c0_35, %c0_36, %c0_37] : memref<1x8x32xf32, #tpu.memory_space<vmem>>, vector<1x8x32xf32>
    %44 = vector.shape_cast %43 : vector<1x8x32xf32> to vector<8x32xf32>
    %cst_38 = arith.constant dense<0.000000e+00> : vector<8x32xf32>
    %45 = tpu.matmul %41, %44, %cst_38 {dimension_numbers = #tpu.dot_dimension_numbers<[1], [0], [0], [1], [0, 0, 1, 1], [], []>} : vector<8x8xf32>, vector<8x32xf32>, vector<8x32xf32> -> vector<8x32xf32>
    %46 = arith.addf %42, %45 : vector<8x32xf32>
    %c0_39 = arith.constant 0 : index
    %c0_40 = arith.constant 0 : index
    %47 = vector.load %arg16[%c0_39, %c0_40] : memref<8x32xf32, #tpu.memory_space<vmem>>, vector<8x32xf32>
    tpu.vector_store %arg16[%c0_39, %c0_40], %46 {strides = array<i32>} : memref<8x32xf32, #tpu.memory_space<vmem>>, vector<8x32xf32>,
    %c0_41 = arith.constant 0 : index
    %c0_42 = arith.constant 0 : index
    %c0_43 = arith.constant 0 : index
    %48 = vector.load %arg15[%c0_41, %c0_42, %c0_43] : memref<1x8x8xf32, #tpu.memory_space<vmem>>, vector<1x8x8xf32>
    %49 = vector.shape_cast %48 : vector<1x8x8xf32> to vector<8x8xf32>
    %50 = arith.addf %49, %40 : vector<8x8xf32>
    %c0_44 = arith.constant 0 : index
    %c0_45 = arith.constant 0 : index
    %c0_46 = arith.constant 0 : index
    %51 = vector.load %arg15[%c0_44, %c0_45, %c0_46] : memref<1x8x8xf32, #tpu.memory_space<vmem>>, vector<1x8x8xf32>
    %52 = vector.shape_cast %51 : vector<1x8x8xf32> to vector<8x8xf32>
    %53 = vector.shape_cast %50 : vector<8x8xf32> to vector<1x8x8xf32>
    tpu.vector_store %arg15[%c0_44, %c0_45, %c0_46], %53 {strides = array<i32>} : memref<1x8x8xf32, #tpu.memory_space<vmem>>, vector<1x8x8xf32>,
    %c3_i32 = arith.constant 3 : i32
    %54 = arith.cmpi eq, %arg2, %c3_i32 : i32
    %55 = arith.extui %54 : i1 to i32
    %c0_i32_47 = arith.constant 0 : i32
    %56 = arith.cmpi ne, %55, %c0_i32_47 : i32
    scf.if %56 {
      %c0_48 = arith.constant 0 : index
      %c0_49 = arith.constant 0 : index
      %57 = vector.load %arg16[%c0_48, %c0_49] : memref<8x32xf32, #tpu.memory_space<vmem>>, vector<8x32xf32>
      %c0_50 = arith.constant 0 : index
      %c0_51 = arith.constant 0 : index
      %58 = vector.load %arg13[%c0_50, %c0_51] : memref<1x32xf32, #tpu.memory_space<vmem>>, vector<1x32xf32>
      %59 = vector.broadcast %58 : vector<1x32xf32> to vector<8x32xf32>
      %60 = arith.addf %57, %59 : vector<8x32xf32>
      %c0_52 = arith.constant 0 : index
      %c0_53 = arith.constant 0 : index
      %c0_54 = arith.constant 0 : index
      %61 = vector.load %arg14[%c0_52, %c0_53, %c0_54] : memref<1x8x32xf32, #tpu.memory_space<vmem>>, vector<1x8x32xf32>
      %62 = vector.shape_cast %61 : vector<1x8x32xf32> to vector<8x32xf32>
      %63 = vector.shape_cast %60 : vector<8x32xf32> to vector<1x8x32xf32>
      tpu.vector_store %arg14[%c0_52, %c0_53, %c0_54], %63 {strides = array<i32>} : memref<1x8x32xf32, #tpu.memory_space<vmem>>, vector<1x8x32xf32>,
      %c0_55 = arith.constant 0 : index
      %c0_56 = arith.constant 0 : index
      %c0_57 = arith.constant 0 : index
      %64 = vector.load %arg15[%c0_55, %c0_56, %c0_57] : memref<1x8x8xf32, #tpu.memory_space<vmem>>, vector<1x8x8xf32>
      %65 = vector.shape_cast %64 : vector<1x8x8xf32> to vector<8x8xf32>
      %cst_58 = arith.constant 2.500000e-01 : f32
      %66 = vector.broadcast %cst_58 : f32 to vector<8x8xf32>
      %67 = arith.mulf %65, %66 : vector<8x8xf32>
      %c0_59 = arith.constant 0 : index
      %c0_60 = arith.constant 0 : index
      %c0_61 = arith.constant 0 : index
      %68 = vector.load %arg15[%c0_59, %c0_60, %c0_61] : memref<1x8x8xf32, #tpu.memory_space<vmem>>, vector<1x8x8xf32>
      %69 = vector.shape_cast %68 : vector<1x8x8xf32> to vector<8x8xf32>
      %70 = vector.shape_cast %67 : vector<8x8xf32> to vector<1x8x8xf32>
      tpu.vector_store %arg15[%c0_59, %c0_60, %c0_61], %70 {strides = array<i32>} : memref<1x8x8xf32, #tpu.memory_space<vmem>>, vector<1x8x8xf32>,
    } else {
    }
    return
  }
  func.func @transform_0(%arg0: i32, %arg1: i32, %arg2: i32) -> (i32, i32, i32) {
    %c0_i32 = arith.constant 0 : i32
    %c0_i32_0 = arith.constant 0 : i32
    return %arg0, %arg1, %c0_i32 : i32, i32, i32
  }
  func.func @transform_1(%arg0: i32, %arg1: i32, %arg2: i32) -> (i32, i32, i32) {
    %c0_i32 = arith.constant 0 : i32
    %c0_i32_0 = arith.constant 0 : i32
    %c0_i32_1 = arith.constant 0 : i32
    return %arg0, %c0_i32, %c0_i32_0 : i32, i32, i32
  }
  func.func @transform_2(%arg0: i32, %arg1: i32, %arg2: i32) -> (i32, i32, i32) {
    %c0_i32 = arith.constant 0 : i32
    %c0_i32_0 = arith.constant 0 : i32
    %c0_i32_1 = arith.constant 0 : i32
    return %arg0, %c0_i32, %c0_i32_0 : i32, i32, i32
  }
  func.func @transform_3(%arg0: i32, %arg1: i32, %arg2: i32) -> (i32, i32, i32) {
    %c0_i32 = arith.constant 0 : i32
    %c0_i32_0 = arith.constant 0 : i32
    %c0_i32_1 = arith.constant 0 : i32
    return %arg2, %c0_i32, %c0_i32_0 : i32, i32, i32
  }
  func.func @transform_4(%arg0: i32, %arg1: i32, %arg2: i32) -> (i32, i32, i32) {
    %c0_i32 = arith.constant 0 : i32
    %c0_i32_0 = arith.constant 0 : i32
    %c0_i32_1 = arith.constant 0 : i32
    return %arg2, %c0_i32, %c0_i32_0 : i32, i32, i32
  }
  func.func @transform_5(%arg0: i32, %arg1: i32, %arg2: i32) -> (i32, i32, i32) {
    %c0_i32 = arith.constant 0 : i32
    %c0_i32_0 = arith.constant 0 : i32
    %c0_i32_1 = arith.constant 0 : i32
    return %arg2, %c0_i32, %c0_i32_0 : i32, i32, i32
  }
  func.func @transform_6(%arg0: i32, %arg1: i32, %arg2: i32) -> (i32, i32, i32) {
    %c0_i32 = arith.constant 0 : i32
    %c0_i32_0 = arith.constant 0 : i32
    %c0_i32_1 = arith.constant 0 : i32
    return %arg2, %c0_i32, %c0_i32_0 : i32, i32, i32
  }
  func.func @transform_7(%arg0: i32, %arg1: i32, %arg2: i32) -> (i32, i32, i32) {
    %c0_i32 = arith.constant 0 : i32
    %c0_i32_0 = arith.constant 0 : i32
    %c0_i32_1 = arith.constant 0 : i32
    return %arg2, %c0_i32, %c0_i32_0 : i32, i32, i32
  }
  func.func @transform_8(%arg0: i32, %arg1: i32, %arg2: i32) -> (i32, i32, i32) {
    %c0_i32 = arith.constant 0 : i32
    %c0_i32_0 = arith.constant 0 : i32
    %c0_i32_1 = arith.constant 0 : i32
    return %arg2, %c0_i32, %c0_i32_0 : i32, i32, i32
  }
  func.func @transform_9(%arg0: i32, %arg1: i32, %arg2: i32) -> (i32, i32, i32) {
    %c0_i32 = arith.constant 0 : i32
    %c0_i32_0 = arith.constant 0 : i32
    %c0_i32_1 = arith.constant 0 : i32
    return %arg2, %c0_i32, %c0_i32_0 : i32, i32, i32
  }
  func.func @transform_10(%arg0: i32, %arg1: i32, %arg2: i32) -> (i32, i32) {
    %c0_i32 = arith.constant 0 : i32
    %c0_i32_0 = arith.constant 0 : i32
    %c0_i32_1 = arith.constant 0 : i32
    return %c0_i32, %c0_i32_0 : i32, i32
  }
  func.func @transform_11(%arg0: i32, %arg1: i32, %arg2: i32) -> (i32, i32, i32) {
    %c0_i32 = arith.constant 0 : i32
    %c0_i32_0 = arith.constant 0 : i32
    return %arg0, %arg1, %c0_i32 : i32, i32, i32
  }
  func.func @transform_12(%arg0: i32, %arg1: i32, %arg2: i32) -> (i32, i32, i32) {
    %c0_i32 = arith.constant 0 : i32
    %c0_i32_0 = arith.constant 0 : i32
    return %arg0, %arg1, %c0_i32 : i32, i32, i32
  }
}

</mosaic_0001>

<llo_original>
// kernel: tpu_custom_call.1
$region0: #{tpu_custom_call.1}
  #allocation0 [shape = 'u32[]', space=smem, size = 0x4, offset = 0x4, fixed_abs, tag = 'smem constant byte address 0x4 - core index']
  #allocation1 [shape = 'u32[144,128]{1,0:T(1,128)}', space=vmem, size = 0x12000, scoped, tag = 'internal scratch']
  #allocation2 [shape = 'f32[8,32]{1,0:T(8,128)}', space=vmem, size = 0x1000, scoped, tag = 'scratch operand']
  %s0 = inlined_call_operand.vmem [shape: f32[2,8,32], index: 0, kind: input, shape index: {}]
  %s1 = inlined_call_operand.vmem [shape: f32[2,8,32], index: 1, kind: input, shape index: {}]
  %s2 = inlined_call_operand.vmem [shape: f32[2,8,32], index: 2, kind: input, shape index: {}]
  %s3 = inlined_call_operand.vmem [shape: f32[4,32,8], index: 3, kind: input, shape index: {}]
  %s4 = inlined_call_operand.vmem [shape: f32[4,1,8], index: 4, kind: input, shape index: {}]
  %s5 = inlined_call_operand.vmem [shape: f32[4,32,8], index: 5, kind: input, shape index: {}]
  %s6 = inlined_call_operand.vmem [shape: f32[4,1,8], index: 6, kind: input, shape index: {}]
  %s7 = inlined_call_operand.vmem [shape: f32[4,32,8], index: 7, kind: input, shape index: {}]
  %s8 = inlined_call_operand.vmem [shape: f32[4,1,8], index: 8, kind: input, shape index: {}]
  %s9 = inlined_call_operand.vmem [shape: f32[4,8,32], index: 9, kind: input, shape index: {}]
  %s10 = inlined_call_operand.vmem [shape: f32[1,32], index: 10, kind: input, shape index: {}]
  %s11 = inlined_call_operand.hbm [shape: f32[2,8,32], index: 11, kind: output, shape index: {0}]
  %s12 = inlined_call_operand.hbm [shape: f32[2,8,8], index: 12, kind: output, shape index: {1}]
  %13 = xla_tuple %s11, %s12
  %s14 = sld [smem:[#allocation0]]
  $region93: #{tpu_custom_call.1} parent=0
    _
  %s16 = ssub.s32 1, %s14
  %s17 = scalar_select 0, %s16, %s14
  $region1: #{tpu_custom_call.1} parent=0
    #allocation3 [shape = 'u8[8192]{0}', space=vmem, size = 0x2000, scoped, tag = 'output window, operand 0']
    #allocation4 [shape = 's32[2]{0}', space=sflag, size = 0x8, scoped, tag = 'scoped memory for tpu_custom_call.1']
    #allocation5 [shape = 'u8[8192]{0}', space=vmem, size = 0x2000, scoped, tag = 'output window, operand 1']
    #allocation6 [shape = 's32[2]{0}', space=sflag, size = 0x8, scoped, tag = 'scoped memory for tpu_custom_call.1']
    %18 = vsyncpa [#allocation4], 0
    %s19 = scalar_lea.sflag [#allocation4], 1
    %20 = vsyncpa %s19, 0
    %21 = vsyncpa [#allocation6], 0
    %s22 = scalar_lea.sflag [#allocation6], 1
    %23 = vsyncpa %s22, 0
    loop: start=0, step=1, limit=10
    $region2: #{tpu_custom_call.1} parent=1 // loop_pre_header
      _
    $region3: #{tpu_custom_call.1} parent=1 // loop_header
      %s25 = sphi 0, %s29
      %p26 = scmp.ge.s32.totalorder %s25, 10
      %s32 = sphi 0, %s51
      %s33 = sphi 0, %s47
      %s34 = sphi 0, %s43
      %s35 = sphi 0, %s32
      %s36 = sphi 0, %s33
      %s37 = sphi 0, %s34
      %s38 = sphi 0, %s35
      %s39 = sphi 0, %s36
      %s40 = sphi 0, %s37
      %s56 = sphi 0, %s58
      %s59 = sphi 0, %s56
      %s60 = sphi 0, %s59
      %s76 = sphi 0, %s60
      %s82 = sphi 0, %s84
      %s85 = sphi 0, %s82
      %s86 = sphi 0, %s85
      %s102 = sphi 0, %s86
      %s108 = sphi 0, %s110
      %s111 = sphi 0, %s108
      %s112 = sphi 0, %s111
      %s128 = sphi 0, %s112
      %s134 = sphi 0, %s136
      %s137 = sphi 0, %s134
      %s138 = sphi 0, %s137
      %s154 = sphi 0, %s138
      %s160 = sphi 0, %s162
      %s163 = sphi 0, %s160
      %s164 = sphi 0, %s163
      %s180 = sphi 0, %s164
      %s186 = sphi 0, %s188
      %s189 = sphi 0, %s186
      %s190 = sphi 0, %s189
      %s206 = sphi 0, %s190
      %s212 = sphi 0, %s214
      %s215 = sphi 0, %s212
      %s216 = sphi 0, %s215
      %s232 = sphi 0, %s216
      %s238 = sphi 0, %s240
      %s241 = sphi 0, %s238
      %s242 = sphi 0, %s241
      %s258 = sphi 0, %s242
      %s264 = sphi 0, %s266
      %s267 = sphi 0, %s264
      %s268 = sphi 0, %s267
      %s284 = sphi 0, %s268
      %s290 = sphi 0, %s292
      %s293 = sphi 0, %s290
      %s294 = sphi 0, %s293
      %s310 = sphi 0, %s294
      %s314 = sphi 0, %s314
      %s316 = sphi 0, %s314
      %s317 = sphi 0, %s316
      %s331 = sphi 0, %s317
      %s339 = sphi 0, %s341
      %s342 = sphi 0, %s339
      %s343 = sphi 0, %s342
      %s359 = sphi 0, %s343
      %s367 = sphi 0, %s369
      %s370 = sphi 0, %s367
      %s371 = sphi 0, %s370
      %s387 = sphi 0, %s371
    $region4: #{tpu_custom_call.1} parent=1 // loop_header_branch
      %28 = sbr.rel (%p26) target = $region8
    $region5: #{tpu_custom_call.1} parent=1 // loop_body
      %s30 = ssub.s32 %s25, 1
      %s31 = ssub.s32 %s25, 2
      %s41 = sadd.s32 1, %s34
      %p42 = scmp.ge.s32.totalorder %s41, 4
      %s43 = scalar_select %p42, 0, %s41
      %s44 = sadd.s32 1, %s33
      %s45 = scalar_select %p42, %s44, %s33
      %p46 = scmp.ge.s32.totalorder %s45, 1
      %s47 = scalar_select %p46, 0, %s45
      %s48 = sadd.s32 1, %s32
      %s49 = scalar_select %p46, %s48, %s32
      %p50 = scmp.ge.s32.totalorder %s49, 2
      %s51 = scalar_select %p50, 0, %s49
      %s52 = ssub.s32 %s32, %s51
      %s53 = ssub.s32 %s33, %s47
      %s54 = sor.u32 %s52, %s53
      %p55 = scmp.eq.s32.totalorder %s54, 0
      %s57 = sadd.s32 %s56, 1
      %s58 = scalar_select %p55, %s56, %s57
      %p61 = pneg %p55
      %p62 = scmp.eq.s32.totalorder %s25, 7
      %p63 = por %p61, %p62
      %p64 = scmp.ne.s32.totalorder %s56, %s59
      %p65 = scmp.eq.s32.totalorder %s25, 0
      %p66 = por %p64, %p65
      %p67 = scmp.ne.s32.totalorder %s56, %s59
      %p68 = scmp.eq.s32.totalorder %s30, 7
      %p69 = por %p67, %p68
      %p70 = scmp.ne.s32.totalorder %s59, %s60
      %p71 = scmp.eq.s32.totalorder %s30, 0
      %p72 = por %p70, %p71
      %p73 = scmp.ne.s32.totalorder %s59, %s60
      %p74 = scmp.eq.s32.totalorder %s31, 7
      %p75 = por %p73, %p74
      %p77 = scmp.ne.s32.totalorder %s60, %s76
      %p78 = scmp.eq.s32.totalorder %s31, 0
      %p79 = por %p77, %p78
      %s80 = ssub.s32 %s32, %s51
      %p81 = scmp.eq.s32.totalorder %s80, 0
      %s83 = sadd.s32 %s82, 1
      %s84 = scalar_select %p81, %s82, %s83
      %p87 = pneg %p81
      %p88 = scmp.eq.s32.totalorder %s25, 7
      %p89 = por %p87, %p88
      %p90 = scmp.ne.s32.totalorder %s82, %s85
      %p91 = scmp.eq.s32.totalorder %s25, 0
      %p92 = por %p90, %p91
      %p93 = scmp.ne.s32.totalorder %s82, %s85
      %p94 = scmp.eq.s32.totalorder %s30, 7
      %p95 = por %p93, %p94
      %p96 = scmp.ne.s32.totalorder %s85, %s86
      %p97 = scmp.eq.s32.totalorder %s30, 0
      %p98 = por %p96, %p97
      %p99 = scmp.ne.s32.totalorder %s85, %s86
      %p100 = scmp.eq.s32.totalorder %s31, 7
      %p101 = por %p99, %p100
      %p103 = scmp.ne.s32.totalorder %s86, %s102
      %p104 = scmp.eq.s32.totalorder %s31, 0
      %p105 = por %p103, %p104
      %s106 = ssub.s32 %s32, %s51
      %p107 = scmp.eq.s32.totalorder %s106, 0
      %s109 = sadd.s32 %s108, 1
      %s110 = scalar_select %p107, %s108, %s109
      %p113 = pneg %p107
      %p114 = scmp.eq.s32.totalorder %s25, 7
      %p115 = por %p113, %p114
      %p116 = scmp.ne.s32.totalorder %s108, %s111
      %p117 = scmp.eq.s32.totalorder %s25, 0
      %p118 = por %p116, %p117
      %p119 = scmp.ne.s32.totalorder %s108, %s111
      %p120 = scmp.eq.s32.totalorder %s30, 7
      %p121 = por %p119, %p120
      %p122 = scmp.ne.s32.totalorder %s111, %s112
      %p123 = scmp.eq.s32.totalorder %s30, 0
      %p124 = por %p122, %p123
      %p125 = scmp.ne.s32.totalorder %s111, %s112
      %p126 = scmp.eq.s32.totalorder %s31, 7
      %p127 = por %p125, %p126
      %p129 = scmp.ne.s32.totalorder %s112, %s128
      %p130 = scmp.eq.s32.totalorder %s31, 0
      %p131 = por %p129, %p130
      %s132 = ssub.s32 %s34, %s43
      %p133 = scmp.eq.s32.totalorder %s132, 0
      %s135 = sadd.s32 %s134, 1
      %s136 = scalar_select %p133, %s134, %s135
      %p139 = pneg %p133
      %p140 = scmp.eq.s32.totalorder %s25, 7
      %p141 = por %p139, %p140
      %p142 = scmp.ne.s32.totalorder %s134, %s137
      %p143 = scmp.eq.s32.totalorder %s25, 0
      %p144 = por %p142, %p143
      %p145 = scmp.ne.s32.totalorder %s134, %s137
      %p146 = scmp.eq.s32.totalorder %s30, 7
      %p147 = por %p145, %p146
      %p148 = scmp.ne.s32.totalorder %s137, %s138
      %p149 = scmp.eq.s32.totalorder %s30, 0
      %p150 = por %p148, %p149
      %p151 = scmp.ne.s32.totalorder %s137, %s138
      %p152 = scmp.eq.s32.totalorder %s31, 7
      %p153 = por %p151, %p152
      %p155 = scmp.ne.s32.totalorder %s138, %s154
      %p156 = scmp.eq.s32.totalorder %s31, 0
      %p157 = por %p155, %p156
      %s158 = ssub.s32 %s34, %s43
      %p159 = scmp.eq.s32.totalorder %s158, 0
      %s161 = sadd.s32 %s160, 1
      %s162 = scalar_select %p159, %s160, %s161
      %p165 = pneg %p159
      %p166 = scmp.eq.s32.totalorder %s25, 7
      %p167 = por %p165, %p166
      %p168 = scmp.ne.s32.totalorder %s160, %s163
      %p169 = scmp.eq.s32.totalorder %s25, 0
      %p170 = por %p168, %p169
      %p171 = scmp.ne.s32.totalorder %s160, %s163
      %p172 = scmp.eq.s32.totalorder %s30, 7
      %p173 = por %p171, %p172
      %p174 = scmp.ne.s32.totalorder %s163, %s164
      %p175 = scmp.eq.s32.totalorder %s30, 0
      %p176 = por %p174, %p175
      %p177 = scmp.ne.s32.totalorder %s163, %s164
      %p178 = scmp.eq.s32.totalorder %s31, 7
      %p179 = por %p177, %p178
      %p181 = scmp.ne.s32.totalorder %s164, %s180
      %p182 = scmp.eq.s32.totalorder %s31, 0
      %p183 = por %p181, %p182
      %s184 = ssub.s32 %s34, %s43
      %p185 = scmp.eq.s32.totalorder %s184, 0
      %s187 = sadd.s32 %s186, 1
      %s188 = scalar_select %p185, %s186, %s187
      %p191 = pneg %p185
      %p192 = scmp.eq.s32.totalorder %s25, 7
      %p193 = por %p191, %p192
      %p194 = scmp.ne.s32.totalorder %s186, %s189
      %p195 = scmp.eq.s32.totalorder %s25, 0
      %p196 = por %p194, %p195
      %p197 = scmp.ne.s32.totalorder %s186, %s189
      %p198 = scmp.eq.s32.totalorder %s30, 7
      %p199 = por %p197, %p198
      %p200 = scmp.ne.s32.totalorder %s189, %s190
      %p201 = scmp.eq.s32.totalorder %s30, 0
      %p202 = por %p200, %p201
      %p203 = scmp.ne.s32.totalorder %s189, %s190
      %p204 = scmp.eq.s32.totalorder %s31, 7
      %p205 = por %p203, %p204
      %p207 = scmp.ne.s32.totalorder %s190, %s206
      %p208 = scmp.eq.s32.totalorder %s31, 0
      %p209 = por %p207, %p208
      %s210 = ssub.s32 %s34, %s43
      %p211 = scmp.eq.s32.totalorder %s210, 0
      %s213 = sadd.s32 %s212, 1
      %s214 = scalar_select %p211, %s212, %s213
      %p217 = pneg %p211
      %p218 = scmp.eq.s32.totalorder %s25, 7
      %p219 = por %p217, %p218
      %p220 = scmp.ne.s32.totalorder %s212, %s215
      %p221 = scmp.eq.s32.totalorder %s25, 0
      %p222 = por %p220, %p221
      %p223 = scmp.ne.s32.totalorder %s212, %s215
      %p224 = scmp.eq.s32.totalorder %s30, 7
      %p225 = por %p223, %p224
      %p226 = scmp.ne.s32.totalorder %s215, %s216
      %p227 = scmp.eq.s32.totalorder %s30, 0
      %p228 = por %p226, %p227
      %p229 = scmp.ne.s32.totalorder %s215, %s216
      %p230 = scmp.eq.s32.totalorder %s31, 7
      %p231 = por %p229, %p230
      %p233 = scmp.ne.s32.totalorder %s216, %s232
      %p234 = scmp.eq.s32.totalorder %s31, 0
      %p235 = por %p233, %p234
      %s236 = ssub.s32 %s34, %s43
      %p237 = scmp.eq.s32.totalorder %s236, 0
      %s239 = sadd.s32 %s238, 1
      %s240 = scalar_select %p237, %s238, %s239
      %p243 = pneg %p237
      %p244 = scmp.eq.s32.totalorder %s25, 7
      %p245 = por %p243, %p244
      %p246 = scmp.ne.s32.totalorder %s238, %s241
      %p247 = scmp.eq.s32.totalorder %s25, 0
      %p248 = por %p246, %p247
      %p249 = scmp.ne.s32.totalorder %s238, %s241
      %p250 = scmp.eq.s32.totalorder %s30, 7
      %p251 = por %p249, %p250
      %p252 = scmp.ne.s32.totalorder %s241, %s242
      %p253 = scmp.eq.s32.totalorder %s30, 0
      %p254 = por %p252, %p253
      %p255 = scmp.ne.s32.totalorder %s241, %s242
      %p256 = scmp.eq.s32.totalorder %s31, 7
      %p257 = por %p255, %p256
      %p259 = scmp.ne.s32.totalorder %s242, %s258
      %p260 = scmp.eq.s32.totalorder %s31, 0
      %p261 = por %p259, %p260
      %s262 = ssub.s32 %s34, %s43
      %p263 = scmp.eq.s32.totalorder %s262, 0
      %s265 = sadd.s32 %s264, 1
      %s266 = scalar_select %p263, %s264, %s265
      %p269 = pneg %p263
      %p270 = scmp.eq.s32.totalorder %s25, 7
      %p271 = por %p269, %p270
      %p272 = scmp.ne.s32.totalorder %s264, %s267
      %p273 = scmp.eq.s32.totalorder %s25, 0
      %p274 = por %p272, %p273
      %p275 = scmp.ne.s32.totalorder %s264, %s267
      %p276 = scmp.eq.s32.totalorder %s30, 7
      %p277 = por %p275, %p276
      %p278 = scmp.ne.s32.totalorder %s267, %s268
      %p279 = scmp.eq.s32.totalorder %s30, 0
      %p280 = por %p278, %p279
      %p281 = scmp.ne.s32.totalorder %s267, %s268
      %p282 = scmp.eq.s32.totalorder %s31, 7
      %p283 = por %p281, %p282
      %p285 = scmp.ne.s32.totalorder %s268, %s284
      %p286 = scmp.eq.s32.totalorder %s31, 0
      %p287 = por %p285, %p286
      %s288 = ssub.s32 %s34, %s43
      %p289 = scmp.eq.s32.totalorder %s288, 0
      %s291 = sadd.s32 %s290, 1
      %s292 = scalar_select %p289, %s290, %s291
      %p295 = pneg %p289
      %p296 = scmp.eq.s32.totalorder %s25, 7
      %p297 = por %p295, %p296
      %p298 = scmp.ne.s32.totalorder %s290, %s293
      %p299 = scmp.eq.s32.totalorder %s25, 0
      %p300 = por %p298, %p299
      %p301 = scmp.ne.s32.totalorder %s290, %s293
      %p302 = scmp.eq.s32.totalorder %s30, 7
      %p303 = por %p301, %p302
      %p304 = scmp.ne.s32.totalorder %s293, %s294
      %p305 = scmp.eq.s32.totalorder %s30, 0
      %p306 = por %p304, %p305
      %p307 = scmp.ne.s32.totalorder %s293, %s294
      %p308 = scmp.eq.s32.totalorder %s31, 7
      %p309 = por %p307, %p308
      %p311 = scmp.ne.s32.totalorder %s294, %s310
      %p312 = scmp.eq.s32.totalorder %s31, 0
      %p313 = por %p311, %p312
      %s315 = sadd.s32 %s314, 1
      %p318 = scmp.eq.s32.totalorder %s25, 7
      %p319 = scmp.ne.s32.totalorder %s314, %s316
      %p320 = scmp.eq.s32.totalorder %s25, 0
      %p321 = por %p319, %p320
      %p322 = scmp.ne.s32.totalorder %s314, %s316
      %p323 = scmp.eq.s32.totalorder %s30, 7
      %p324 = por %p322, %p323
      %p325 = scmp.ne.s32.totalorder %s316, %s317
      %p326 = scmp.eq.s32.totalorder %s30, 0
      %p327 = por %p325, %p326
      %p328 = scmp.ne.s32.totalorder %s316, %s317
      %p329 = scmp.eq.s32.totalorder %s31, 7
      %p330 = por %p328, %p329
      %p332 = scmp.ne.s32.totalorder %s317, %s331
      %p333 = scmp.eq.s32.totalorder %s31, 0
      %p334 = por %p332, %p333
      %s335 = ssub.s32 %s32, %s51
      %s336 = ssub.s32 %s33, %s47
      %s337 = sor.u32 %s335, %s336
      %p338 = scmp.eq.s32.totalorder %s337, 0
      %s340 = sadd.s32 %s339, 1
      %s341 = scalar_select %p338, %s339, %s340
      %p344 = pneg %p338
      %p345 = scmp.eq.s32.totalorder %s25, 7
      %p346 = por %p344, %p345
      %p347 = scmp.ne.s32.totalorder %s339, %s342
      %p348 = scmp.eq.s32.totalorder %s25, 0
      %p349 = por %p347, %p348
      %p350 = scmp.ne.s32.totalorder %s339, %s342
      %p351 = scmp.eq.s32.totalorder %s30, 7
      %p352 = por %p350, %p351
      %p353 = scmp.ne.s32.totalorder %s342, %s343
      %p354 = scmp.eq.s32.totalorder %s30, 0
      %p355 = por %p353, %p354
      %p356 = scmp.ne.s32.totalorder %s342, %s343
      %p357 = scmp.eq.s32.totalorder %s31, 7
      %p358 = por %p356, %p357
      %p360 = scmp.ne.s32.totalorder %s343, %s359
      %p361 = scmp.eq.s32.totalorder %s31, 0
      %p362 = por %p360, %p361
      %s363 = ssub.s32 %s32, %s51
      %s364 = ssub.s32 %s33, %s47
      %s365 = sor.u32 %s363, %s364
      %p366 = scmp.eq.s32.totalorder %s365, 0
      %s368 = sadd.s32 %s367, 1
      %s369 = scalar_select %p366, %s367, %s368
      %p372 = pneg %p366
      %p373 = scmp.eq.s32.totalorder %s25, 7
      %p374 = por %p372, %p373
      %p375 = scmp.ne.s32.totalorder %s367, %s370
      %p376 = scmp.eq.s32.totalorder %s25, 0
      %p377 = por %p375, %p376
      %p378 = scmp.ne.s32.totalorder %s367, %s370
      %p379 = scmp.eq.s32.totalorder %s30, 7
      %p380 = por %p378, %p379
      %p381 = scmp.ne.s32.totalorder %s370, %s371
      %p382 = scmp.eq.s32.totalorder %s30, 0
      %p383 = por %p381, %p382
      %p384 = scmp.ne.s32.totalorder %s370, %s371
      %p385 = scmp.eq.s32.totalorder %s31, 7
      %p386 = por %p384, %p385
      %p388 = scmp.ne.s32.totalorder %s371, %s387
      %p389 = scmp.eq.s32.totalorder %s31, 0
      %p390 = por %p388, %p389
      %p391 = scmp.le.s32.totalorder 1, %s25
      %p392 = scmp.lt.s32.totalorder %s25, 9
      %p393 = pnand %p391, %p392
      %p394 = pneg %p393
      // Predicated region
      $region9: #{tpu_custom_call.1} parent=5 // pred_check
        _
      $region10: #{tpu_custom_call.1} parent=5 // pred_check_branch
        %396 = sbr.rel (%p393) target = $region12
      $region11: #{tpu_custom_call.1} parent=5 // pred_region
        %s397 = ssub.s32 %s25, 1
        // Predicated region
        $region13: #{tpu_custom_call.1} parent=11 // pred_check
          %p398 = pneg %p327
        $region14: #{tpu_custom_call.1} parent=11 // pred_check_branch
          %400 = sbr.rel (%p398) target = $region16
        $region15: #{tpu_custom_call.1} parent=11 // pred_region
          _
        $region16: #{tpu_custom_call.1} parent=11 // pred_fallthru
          _
      $region12: #{tpu_custom_call.1} parent=5 // pred_fallthru
        _
      %p401 = scmp.lt.s32.totalorder %s25, 8
      // Predicated region
      $region17: #{tpu_custom_call.1} parent=5 // pred_check
        %p402 = pneg %p401
      $region18: #{tpu_custom_call.1} parent=5 // pred_check_branch
        %404 = sbr.rel (%p402) target = $region20
      $region19: #{tpu_custom_call.1} parent=5 // pred_region
        // Predicated region
        $region21: #{tpu_custom_call.1} parent=19 // pred_check
          %p405 = pneg %p66
        $region22: #{tpu_custom_call.1} parent=19 // pred_check_branch
          %407 = sbr.rel (%p405) target = $region24
        $region23: #{tpu_custom_call.1} parent=19 // pred_region
          %p408 = scmp.lt.s32.totalorder %s32, 1
          %s409 = scalar_select %p408, %s32, 1
          %p410 = scmp.lt.s32.totalorder %s33, 0
          %s411 = scalar_select %p410, %s33, 0
          %s412 = sadd.s32 %s411, %s409
          %s413 = smul.addr %s412, 8
          %s414 = scalar_lea.vmem %s0, %s413
        $region24: #{tpu_custom_call.1} parent=19 // pred_fallthru
          _
        // Predicated region
        $region25: #{tpu_custom_call.1} parent=19 // pred_check
          %p415 = pneg %p92
        $region26: #{tpu_custom_call.1} parent=19 // pred_check_branch
          %417 = sbr.rel (%p415) target = $region28
        $region27: #{tpu_custom_call.1} parent=19 // pred_region
          %p418 = scmp.lt.s32.totalorder %s32, 1
          %s419 = scalar_select %p418, %s32, 1
          %s420 = smul.addr %s419, 8
          %s421 = scalar_lea.vmem %s1, %s420
        $region28: #{tpu_custom_call.1} parent=19 // pred_fallthru
          _
        // Predicated region
        $region29: #{tpu_custom_call.1} parent=19 // pred_check
          %p422 = pneg %p118
        $region30: #{tpu_custom_call.1} parent=19 // pred_check_branch
          %424 = sbr.rel (%p422) target = $region32
        $region31: #{tpu_custom_call.1} parent=19 // pred_region
          %p425 = scmp.lt.s32.totalorder %s32, 1
          %s426 = scalar_select %p425, %s32, 1
          %s427 = smul.addr %s426, 8
          %s428 = scalar_lea.vmem %s2, %s427
        $region32: #{tpu_custom_call.1} parent=19 // pred_fallthru
          _
        // Predicated region
        $region33: #{tpu_custom_call.1} parent=19 // pred_check
          %p429 = pneg %p144
        $region34: #{tpu_custom_call.1} parent=19 // pred_check_branch
          %431 = sbr.rel (%p429) target = $region36
        $region35: #{tpu_custom_call.1} parent=19 // pred_region
          %p432 = scmp.lt.s32.totalorder %s34, 3
          %s433 = scalar_select %p432, %s34, 3
          %s434 = smul.addr %s433, 4
          %s435 = smul.addr %s434, 8
          %s436 = scalar_lea.vmem %s3, %s435
        $region36: #{tpu_custom_call.1} parent=19 // pred_fallthru
          _
        // Predicated region
        $region37: #{tpu_custom_call.1} parent=19 // pred_check
          %p437 = pneg %p170
        $region38: #{tpu_custom_call.1} parent=19 // pred_check_branch
          %439 = sbr.rel (%p437) target = $region40
        $region39: #{tpu_custom_call.1} parent=19 // pred_region
          %p440 = scmp.lt.s32.totalorder %s34, 3
          %s441 = scalar_select %p440, %s34, 3
          %s442 = scalar_lea.vmem %s4, %s441
        $region40: #{tpu_custom_call.1} parent=19 // pred_fallthru
          _
        // Predicated region
        $region41: #{tpu_custom_call.1} parent=19 // pred_check
          %p443 = pneg %p196
        $region42: #{tpu_custom_call.1} parent=19 // pred_check_branch
          %445 = sbr.rel (%p443) target = $region44
        $region43: #{tpu_custom_call.1} parent=19 // pred_region
          %p446 = scmp.lt.s32.totalorder %s34, 3
          %s447 = scalar_select %p446, %s34, 3
          %s448 = smul.addr %s447, 4
          %s449 = smul.addr %s448, 8
          %s450 = scalar_lea.vmem %s5, %s449
        $region44: #{tpu_custom_call.1} parent=19 // pred_fallthru
          _
        // Predicated region
        $region45: #{tpu_custom_call.1} parent=19 // pred_check
          %p451 = pneg %p222
        $region46: #{tpu_custom_call.1} parent=19 // pred_check_branch
          %453 = sbr.rel (%p451) target = $region48
        $region47: #{tpu_custom_call.1} parent=19 // pred_region
          %p454 = scmp.lt.s32.totalorder %s34, 3
          %s455 = scalar_select %p454, %s34, 3
          %s456 = scalar_lea.vmem %s6, %s455
        $region48: #{tpu_custom_call.1} parent=19 // pred_fallthru
          _
        // Predicated region
        $region49: #{tpu_custom_call.1} parent=19 // pred_check
          %p457 = pneg %p248
        $region50: #{tpu_custom_call.1} parent=19 // pred_check_branch
          %459 = sbr.rel (%p457) target = $region52
        $region51: #{tpu_custom_call.1} parent=19 // pred_region
          %p460 = scmp.lt.s32.totalorder %s34, 3
          %s461 = scalar_select %p460, %s34, 3
          %s462 = smul.addr %s461, 4
          %s463 = smul.addr %s462, 8
          %s464 = scalar_lea.vmem %s7, %s463
        $region52: #{tpu_custom_call.1} parent=19 // pred_fallthru
          _
        // Predicated region
        $region53: #{tpu_custom_call.1} parent=19 // pred_check
          %p465 = pneg %p274
        $region54: #{tpu_custom_call.1} parent=19 // pred_check_branch
          %467 = sbr.rel (%p465) target = $region56
        $region55: #{tpu_custom_call.1} parent=19 // pred_region
          %p468 = scmp.lt.s32.totalorder %s34, 3
          %s469 = scalar_select %p468, %s34, 3
          %s470 = scalar_lea.vmem %s8, %s469
        $region56: #{tpu_custom_call.1} parent=19 // pred_fallthru
          _
        // Predicated region
        $region57: #{tpu_custom_call.1} parent=19 // pred_check
          %p471 = pneg %p300
        $region58: #{tpu_custom_call.1} parent=19 // pred_check_branch
          %473 = sbr.rel (%p471) target = $region60
        $region59: #{tpu_custom_call.1} parent=19 // pred_region
          %p474 = scmp.lt.s32.totalorder %s34, 3
          %s475 = scalar_select %p474, %s34, 3
          %s476 = smul.addr %s475, 8
          %s477 = scalar_lea.vmem %s9, %s476
        $region60: #{tpu_custom_call.1} parent=19 // pred_fallthru
          _
      $region20: #{tpu_custom_call.1} parent=5 // pred_fallthru
        _
      %p478 = scmp.le.s32.totalorder 1, %s25
      %p479 = scmp.lt.s32.totalorder %s25, 9
      %p480 = pnand %p478, %p479
      %p481 = pneg %p480
      // Predicated region
      $region61: #{tpu_custom_call.1} parent=5 // pred_check
        _
      $region62: #{tpu_custom_call.1} parent=5 // pred_check_branch
        %483 = sbr.rel (%p480) target = $region64
      $region63: #{tpu_custom_call.1} parent=5 // pred_region
        %s484 = ssub.s32 %s25, 1
        %p485 = scmp.lt.s32.totalorder %s35, 1
        %s486 = scalar_select %p485, %s35, 1
        %p487 = scmp.lt.s32.totalorder %s36, 0
        %s488 = scalar_select %p487, %s36, 0
        %s489 = sadd.s32 %s488, %s486
        %s490 = smul.addr %s489, 8
        %s491 = scalar_lea.vmem %s0, %s490
        %p492 = pneg %p72
        %p493 = pneg %p69
        %p494 = scmp.lt.s32.totalorder %s35, 1
        %s495 = scalar_select %p494, %s35, 1
        %s496 = smul.addr %s495, 8
        %s497 = scalar_lea.vmem %s1, %s496
        %p498 = pneg %p98
        %p499 = pneg %p95
        %p500 = scmp.lt.s32.totalorder %s35, 1
        %s501 = scalar_select %p500, %s35, 1
        %s502 = smul.addr %s501, 8
        %s503 = scalar_lea.vmem %s2, %s502
        %p504 = pneg %p124
        %p505 = pneg %p121
        %p506 = scmp.lt.s32.totalorder %s37, 3
        %s507 = scalar_select %p506, %s37, 3
        %s508 = smul.addr %s507, 4
        %s509 = smul.addr %s508, 8
        %s510 = scalar_lea.vmem %s3, %s509
        %p511 = pneg %p150
        %p512 = pneg %p147
        %p513 = scmp.lt.s32.totalorder %s37, 3
        %s514 = scalar_select %p513, %s37, 3
        %s515 = scalar_lea.vmem %s4, %s514
        %p516 = pneg %p176
        %p517 = pneg %p173
        %p518 = scmp.lt.s32.totalorder %s37, 3
        %s519 = scalar_select %p518, %s37, 3
        %s520 = smul.addr %s519, 4
        %s521 = smul.addr %s520, 8
        %s522 = scalar_lea.vmem %s5, %s521
        %p523 = pneg %p202
        %p524 = pneg %p199
        %p525 = scmp.lt.s32.totalorder %s37, 3
        %s526 = scalar_select %p525, %s37, 3
        %s527 = scalar_lea.vmem %s6, %s526
        %p528 = pneg %p228
        %p529 = pneg %p225
        %p530 = scmp.lt.s32.totalorder %s37, 3
        %s531 = scalar_select %p530, %s37, 3
        %s532 = smul.addr %s531, 4
        %s533 = smul.addr %s532, 8
        %s534 = scalar_lea.vmem %s7, %s533
        %p535 = pneg %p254
        %p536 = pneg %p251
        %p537 = scmp.lt.s32.totalorder %s37, 3
        %s538 = scalar_select %p537, %s37, 3
        %s539 = scalar_lea.vmem %s8, %s538
        %p540 = pneg %p280
        %p541 = pneg %p277
        %p542 = scmp.lt.s32.totalorder %s37, 3
        %s543 = scalar_select %p542, %s37, 3
        %s544 = smul.addr %s543, 8
        %s545 = scalar_lea.vmem %s9, %s544
        %p546 = pneg %p306
        %p547 = pneg %p303
        %p548 = pneg %p327
        %p549 = pneg %p324
        %p550 = pneg %p355
        %p551 = pneg %p352
        %s552 = sand.u32 %s342, 1
        %s553 = scalar_lea.sflag [#allocation4], %s552
        %s554 = sand.u32 %s342, 1
        %s555 = smul.addr %s554, 8
        %s556 = scalar_lea.vmem [#allocation3], %s555
        %p557 = pneg %p383
        %p558 = pneg %p380
        %s559 = sand.u32 %s370, 1
        %s560 = scalar_lea.sflag [#allocation6], %s559
        %s561 = sand.u32 %s370, 1
        %s562 = smul.addr %s561, 8
        %s563 = scalar_lea.vmem [#allocation5], %s562
        %p564 = scmp.lt.s32.totalorder %s35, 1
        %s565 = scalar_select %p564, %s35, 1
        %p566 = scmp.lt.s32.totalorder %s36, 0
        %s567 = scalar_select %p566, %s36, 0
        %s568 = sadd.s32 %s567, %s565
        %s569 = smul.addr %s568, 8
        %s570 = scalar_lea.vmem %s0, %s569
        %p571 = scmp.lt.s32.totalorder %s35, 1
        %s572 = scalar_select %p571, %s35, 1
        %s573 = smul.addr %s572, 8
        %s574 = scalar_lea.vmem %s1, %s573
        %p575 = scmp.lt.s32.totalorder %s35, 1
        %s576 = scalar_select %p575, %s35, 1
        %s577 = smul.addr %s576, 8
        %s578 = scalar_lea.vmem %s2, %s577
        %p579 = scmp.lt.s32.totalorder %s37, 3
        %s580 = scalar_select %p579, %s37, 3
        %s581 = smul.addr %s580, 4
        %s582 = smul.addr %s581, 8
        %s583 = scalar_lea.vmem %s3, %s582
        %p584 = scmp.lt.s32.totalorder %s37, 3
        %s585 = scalar_select %p584, %s37, 3
        %s586 = scalar_lea.vmem %s4, %s585
        %p587 = scmp.lt.s32.totalorder %s37, 3
        %s588 = scalar_select %p587, %s37, 3
        %s589 = smul.addr %s588, 4
        %s590 = smul.addr %s589, 8
        %s591 = scalar_lea.vmem %s5, %s590
        %p592 = scmp.lt.s32.totalorder %s37, 3
        %s593 = scalar_select %p592, %s37, 3
        %s594 = scalar_lea.vmem %s6, %s593
        %p595 = scmp.lt.s32.totalorder %s37, 3
        %s596 = scalar_select %p595, %s37, 3
        %s597 = smul.addr %s596, 4
        %s598 = smul.addr %s597, 8
        %s599 = scalar_lea.vmem %s7, %s598
        %p600 = scmp.lt.s32.totalorder %s37, 3
        %s601 = scalar_select %p600, %s37, 3
        %s602 = scalar_lea.vmem %s8, %s601
        %p603 = scmp.lt.s32.totalorder %s37, 3
        %s604 = scalar_select %p603, %s37, 3
        %s605 = smul.addr %s604, 8
        %s606 = scalar_lea.vmem %s9, %s605
        %v607 = vld [vmem:[%s570] sm:$0xff]
        %v608 = vld [vmem:[%s583] sm:$0xff]
        %v609 = vld [vmem:[%s583 + $0x8] sm:$0xff]
        %v610 = vld [vmem:[%s583 + $0x10] sm:$0xff]
        %v611 = vld [vmem:[%s583 + $0x18] sm:$0xff]
        %v612 = vld [vmem:[%s586] sm:$0x1]
        %v614 = vlaneseq
        %v615 = vshrl.u32 %v614, 7
        %v616 = vsub.s32 0, %v615
        %v617 = vrot.slane %v612, %v616
        %vm619 = vcmask 261120
        %v621 = vsel %vm619, %v607, 0
        %623 = vmatprep.subr.mxu0 0.0
        %624 = vmatpush1.msra.mxu0 %v608
        %625 = vmatprep.subr.mxu0 0.0
        %626 = vmatpush1.msra.mxu0 %v609
        %627 = vmatprep.subr.mxu0 0.0
        %628 = vmatpush1.msra.mxu0 %v610
        %629 = vmatprep.subr.mxu0 0.0
        %630 = vmatpush1.msra.mxu0 %v611
        %631 = vmatprep.subr.mxu0 0.0
        %632 = vmatpush1.msra.mxu0 0.0
        %633 = vmatprep.subr.mxu0 0.0
        %634 = vmatpush1.msra.mxu0 0.0
        %635 = vmatprep.subr.mxu0 0.0
        %636 = vmatpush1.msra.mxu0 0.0
        %637 = vmatprep.subr.mxu0 0.0
        %638 = vmatpush1.msra.mxu0 0.0
        %639 = vmatprep.subr.mxu0 0.0
        %640 = vmatpush1.msra.mxu0 0.0
        %641 = vmatprep.subr.mxu0 0.0
        %642 = vmatpush1.msra.mxu0 0.0
        %643 = vmatprep.subr.mxu0 0.0
        %644 = vmatpush1.msra.mxu0 0.0
        %645 = vmatprep.subr.mxu0 0.0
        %646 = vmatpush1.msra.mxu0 0.0
        %647 = vmatprep.subr.mxu0 0.0
        %648 = vmatpush1.msra.mxu0 0.0
        %649 = vmatprep.subr.mxu0 0.0
        %650 = vmatpush1.msra.mxu0 0.0
        %651 = vmatprep.subr.mxu0 0.0
        %652 = vmatpush1.msra.mxu0 0.0
        %653 = vmatprep.subr.mxu0 0.0
        %654 = vmatpush1.msra.mxu0 0.0
        %655 = vmatprep.subr.mxu0 0.0
        %656 = vmatpush1.msra.mxu0 0.0
        %657 = vmatprep.subr.mxu0 0.0
        %658 = vmatpush1.msra.mxu0 0.0
        %659 = vmatprep.subr.mxu0 0.0
        %660 = vmatpush1.msra.mxu0 0.0
        %661 = vmatprep.subr.mxu0 0.0
        %662 = vmatpush1.msra.mxu0 0.0
        %663 = vmatprep.subr.mxu0 0.0
        %664 = vmatpush1.msra.mxu0 0.0
        %665 = vmatprep.subr.mxu0 0.0
        %666 = vmatpush1.msra.mxu0 0.0
        %667 = vmatprep.subr.mxu0 0.0
        %668 = vmatpush1.msra.mxu0 0.0
        %669 = vmatprep.subr.mxu0 0.0
        %670 = vmatpush1.msra.mxu0 0.0
        %671 = vmatprep.subr.mxu0 0.0
        %672 = vmatpush1.msra.mxu0 0.0
        %673 = vmatprep.subr.mxu0 0.0
        %674 = vmatpush1.msra.mxu0 0.0
        %675 = vmatprep.subr.mxu0 0.0
        %676 = vmatpush1.msra.mxu0 0.0
        %677 = vmatprep.subr.mxu0 0.0
        %678 = vmatpush1.msra.mxu0 0.0
        %679 = vmatprep.subr.mxu0 0.0
        %680 = vmatpush1.msra.mxu0 0.0
        %681 = vmatprep.subr.mxu0 0.0
        %682 = vmatpush1.msra.mxu0 0.0
        %683 = vmatprep.subr.mxu0 0.0
        %684 = vmatpush1.msra.mxu0 0.0
        %685 = vmatprep.subr.mxu0 0.0
        %686 = vmatpush1.msra.mxu0 0.0
        %687 = vmatprep.mubr.f32.mxu0 0.0
        %688 = vmatmul.mubr.f32.gmra.mrb[0].mxu0 %v621
        %v689 = vpop.f32.mrb[0].mxu0
        %v690 = vadd.f32 %v617, %v689
        %v691 = vpop.f32.mrb[0].mxu0
        %692 = vdwg.mxu0
        %v693 = vld [vmem:[%s574] sm:$0xff]
        %v694 = vld [vmem:[%s591] sm:$0xff]
        %v695 = vld [vmem:[%s591 + $0x8] sm:$0xff]
        %v696 = vld [vmem:[%s591 + $0x10] sm:$0xff]
        %v697 = vld [vmem:[%s591 + $0x18] sm:$0xff]
        %v698 = vld [vmem:[%s594] sm:$0x1]
        %v700 = vlaneseq
        %v701 = vshrl.u32 %v700, 7
        %v702 = vsub.s32 0, %v701
        %v703 = vrot.slane %v698, %v702
        %v706 = vsel %vm619, %v693, 0
        %708 = vmatprep.subr.mxu0 0.0
        %709 = vmatpush1.msra.mxu0 %v694
        %710 = vmatprep.subr.mxu0 0.0
        %711 = vmatpush1.msra.mxu0 %v695
        %712 = vmatprep.subr.mxu0 0.0
        %713 = vmatpush1.msra.mxu0 %v696
        %714 = vmatprep.subr.mxu0 0.0
        %715 = vmatpush1.msra.mxu0 %v697
        %716 = vmatprep.subr.mxu0 0.0
        %717 = vmatpush1.msra.mxu0 0.0
        %718 = vmatprep.subr.mxu0 0.0
        %719 = vmatpush1.msra.mxu0 0.0
        %720 = vmatprep.subr.mxu0 0.0
        %721 = vmatpush1.msra.mxu0 0.0
        %722 = vmatprep.subr.mxu0 0.0
        %723 = vmatpush1.msra.mxu0 0.0
        %724 = vmatprep.subr.mxu0 0.0
        %725 = vmatpush1.msra.mxu0 0.0
        %726 = vmatprep.subr.mxu0 0.0
        %727 = vmatpush1.msra.mxu0 0.0
        %728 = vmatprep.subr.mxu0 0.0
        %729 = vmatpush1.msra.mxu0 0.0
        %730 = vmatprep.subr.mxu0 0.0
        %731 = vmatpush1.msra.mxu0 0.0
        %732 = vmatprep.subr.mxu0 0.0
        %733 = vmatpush1.msra.mxu0 0.0
        %734 = vmatprep.subr.mxu0 0.0
        %735 = vmatpush1.msra.mxu0 0.0
        %736 = vmatprep.subr.mxu0 0.0
        %737 = vmatpush1.msra.mxu0 0.0
        %738 = vmatprep.subr.mxu0 0.0
        %739 = vmatpush1.msra.mxu0 0.0
        %740 = vmatprep.subr.mxu0 0.0
        %741 = vmatpush1.msra.mxu0 0.0
        %742 = vmatprep.subr.mxu0 0.0
        %743 = vmatpush1.msra.mxu0 0.0
        %744 = vmatprep.subr.mxu0 0.0
        %745 = vmatpush1.msra.mxu0 0.0
        %746 = vmatprep.subr.mxu0 0.0
        %747 = vmatpush1.msra.mxu0 0.0
        %748 = vmatprep.subr.mxu0 0.0
        %749 = vmatpush1.msra.mxu0 0.0
        %750 = vmatprep.subr.mxu0 0.0
        %751 = vmatpush1.msra.mxu0 0.0
        %752 = vmatprep.subr.mxu0 0.0
        %753 = vmatpush1.msra.mxu0 0.0
        %754 = vmatprep.subr.mxu0 0.0
        %755 = vmatpush1.msra.mxu0 0.0
        %756 = vmatprep.subr.mxu0 0.0
        %757 = vmatpush1.msra.mxu0 0.0
        %758 = vmatprep.subr.mxu0 0.0
        %759 = vmatpush1.msra.mxu0 0.0
        %760 = vmatprep.subr.mxu0 0.0
        %761 = vmatpush1.msra.mxu0 0.0
        %762 = vmatprep.subr.mxu0 0.0
        %763 = vmatpush1.msra.mxu0 0.0
        %764 = vmatprep.subr.mxu0 0.0
        %765 = vmatpush1.msra.mxu0 0.0
        %766 = vmatprep.subr.mxu0 0.0
        %767 = vmatpush1.msra.mxu0 0.0
        %768 = vmatprep.subr.mxu0 0.0
        %769 = vmatpush1.msra.mxu0 0.0
        %770 = vmatprep.subr.mxu0 0.0
        %771 = vmatpush1.msra.mxu0 0.0
        %772 = vmatprep.mubr.f32.mxu0 0.0
        %773 = vmatmul.mubr.f32.gmra.mrb[0].mxu0 %v706
        %v774 = vpop.f32.mrb[0].mxu0
        %v775 = vadd.f32 %v703, %v774
        %v776 = vpop.f32.mrb[0].mxu0
        %777 = vdwg.mxu0
        %v778 = vld [vmem:[%s578] sm:$0xff]
        %v779 = vld [vmem:[%s599] sm:$0xff]
        %v780 = vld [vmem:[%s599 + $0x8] sm:$0xff]
        %v781 = vld [vmem:[%s599 + $0x10] sm:$0xff]
        %v782 = vld [vmem:[%s599 + $0x18] sm:$0xff]
        %v783 = vld [vmem:[%s602] sm:$0x1]
        %v785 = vlaneseq
        %v786 = vshrl.u32 %v785, 7
        %v787 = vsub.s32 0, %v786
        %v788 = vrot.slane %v783, %v787
        %v791 = vsel %vm619, %v778, 0
        %793 = vmatprep.subr.mxu0 0.0
        %794 = vmatpush1.msra.mxu0 %v779
        %795 = vmatprep.subr.mxu0 0.0
        %796 = vmatpush1.msra.mxu0 %v780
        %797 = vmatprep.subr.mxu0 0.0
        %798 = vmatpush1.msra.mxu0 %v781
        %799 = vmatprep.subr.mxu0 0.0
        %800 = vmatpush1.msra.mxu0 %v782
        %801 = vmatprep.subr.mxu0 0.0
        %802 = vmatpush1.msra.mxu0 0.0
        %803 = vmatprep.subr.mxu0 0.0
        %804 = vmatpush1.msra.mxu0 0.0
        %805 = vmatprep.subr.mxu0 0.0
        %806 = vmatpush1.msra.mxu0 0.0
        %807 = vmatprep.subr.mxu0 0.0
        %808 = vmatpush1.msra.mxu0 0.0
        %809 = vmatprep.subr.mxu0 0.0
        %810 = vmatpush1.msra.mxu0 0.0
        %811 = vmatprep.subr.mxu0 0.0
        %812 = vmatpush1.msra.mxu0 0.0
        %813 = vmatprep.subr.mxu0 0.0
        %814 = vmatpush1.msra.mxu0 0.0
        %815 = vmatprep.subr.mxu0 0.0
        %816 = vmatpush1.msra.mxu0 0.0
        %817 = vmatprep.subr.mxu0 0.0
        %818 = vmatpush1.msra.mxu0 0.0
        %819 = vmatprep.subr.mxu0 0.0
        %820 = vmatpush1.msra.mxu0 0.0
        %821 = vmatprep.subr.mxu0 0.0
        %822 = vmatpush1.msra.mxu0 0.0
        %823 = vmatprep.subr.mxu0 0.0
        %824 = vmatpush1.msra.mxu0 0.0
        %825 = vmatprep.subr.mxu0 0.0
        %826 = vmatpush1.msra.mxu0 0.0
        %827 = vmatprep.subr.mxu0 0.0
        %828 = vmatpush1.msra.mxu0 0.0
        %829 = vmatprep.subr.mxu0 0.0
        %830 = vmatpush1.msra.mxu0 0.0
        %831 = vmatprep.subr.mxu0 0.0
        %832 = vmatpush1.msra.mxu0 0.0
        %833 = vmatprep.subr.mxu0 0.0
        %834 = vmatpush1.msra.mxu0 0.0
        %835 = vmatprep.subr.mxu0 0.0
        %836 = vmatpush1.msra.mxu0 0.0
        %837 = vmatprep.subr.mxu0 0.0
        %838 = vmatpush1.msra.mxu0 0.0
        %839 = vmatprep.subr.mxu0 0.0
        %840 = vmatpush1.msra.mxu0 0.0
        %841 = vmatprep.subr.mxu0 0.0
        %842 = vmatpush1.msra.mxu0 0.0
        %843 = vmatprep.subr.mxu0 0.0
        %844 = vmatpush1.msra.mxu0 0.0
        %845 = vmatprep.subr.mxu0 0.0
        %846 = vmatpush1.msra.mxu0 0.0
        %847 = vmatprep.subr.mxu0 0.0
        %848 = vmatpush1.msra.mxu0 0.0
        %849 = vmatprep.subr.mxu0 0.0
        %850 = vmatpush1.msra.mxu0 0.0
        %851 = vmatprep.subr.mxu0 0.0
        %852 = vmatpush1.msra.mxu0 0.0
        %853 = vmatprep.subr.mxu0 0.0
        %854 = vmatpush1.msra.mxu0 0.0
        %855 = vmatprep.subr.mxu0 0.0
        %856 = vmatpush1.msra.mxu0 0.0
        %857 = vmatprep.mubr.f32.mxu0 0.0
        %858 = vmatmul.mubr.f32.gmra.mrb[0].mxu0 %v791
        %v859 = vpop.f32.mrb[0].mxu0
        %v860 = vadd.f32 %v788, %v859
        %v861 = vpop.f32.mrb[0].mxu0
        %862 = vdwg.mxu0
        %p863 = scmp.eq.s32.totalorder %s37, 0
        // Predicated region
        $region65: #{tpu_custom_call.1} parent=63 // pred_check
          %p864 = pneg %p863
        $region66: #{tpu_custom_call.1} parent=63 // pred_check_branch
          %866 = sbr.rel (%p864) target = $region68
        $region67: #{tpu_custom_call.1} parent=63 // pred_region
          %867 = vst.msk [vmem:[#allocation2] sm:$0xff] %vm619, 0.0
          %vm868 = vcmask 64512
          %869 = vst.msk [vmem:[%s563] sm:$0xff] %vm868, 0.0
        $region68: #{tpu_custom_call.1} parent=63 // pred_fallthru
          _
        %vm870 = vcmask 64512
        %v872 = vsel %vm870, %v690, 0
        %v875 = vsel %vm870, %v775, 0
        %877 = vmatprep.subr.mxu0 0.0
        %878 = vmatpush1.xpose.msra.mxu0 %v875
        %879 = vmatprep.subr.mxu0 0.0
        %880 = vmatpush1.xpose.msra.mxu0 0.0
        %881 = vmatprep.subr.mxu0 0.0
        %882 = vmatpush1.xpose.msra.mxu0 0.0
        %883 = vmatprep.subr.mxu0 0.0
        %884 = vmatpush1.xpose.msra.mxu0 0.0
        %885 = vmatprep.subr.mxu0 0.0
        %886 = vmatpush1.xpose.msra.mxu0 0.0
        %887 = vmatprep.subr.mxu0 0.0
        %888 = vmatpush1.xpose.msra.mxu0 0.0
        %889 = vmatprep.subr.mxu0 0.0
        %890 = vmatpush1.xpose.msra.mxu0 0.0
        %891 = vmatprep.subr.mxu0 0.0
        %892 = vmatpush1.xpose.msra.mxu0 0.0
        %893 = vmatprep.subr.mxu0 0.0
        %894 = vmatpush1.xpose.msra.mxu0 0.0
        %895 = vmatprep.subr.mxu0 0.0
        %896 = vmatpush1.xpose.msra.mxu0 0.0
        %897 = vmatprep.subr.mxu0 0.0
        %898 = vmatpush1.xpose.msra.mxu0 0.0
        %899 = vmatprep.subr.mxu0 0.0
        %900 = vmatpush1.xpose.msra.mxu0 0.0
        %901 = vmatprep.subr.mxu0 0.0
        %902 = vmatpush1.xpose.msra.mxu0 0.0
        %903 = vmatprep.subr.mxu0 0.0
        %904 = vmatpush1.xpose.msra.mxu0 0.0
        %905 = vmatprep.subr.mxu0 0.0
        %906 = vmatpush1.xpose.msra.mxu0 0.0
        %907 = vmatprep.subr.mxu0 0.0
        %908 = vmatpush1.xpose.msra.mxu0 0.0
        %909 = vmatprep.subr.mxu0 0.0
        %910 = vmatpush1.xpose.msra.mxu0 0.0
        %911 = vmatprep.subr.mxu0 0.0
        %912 = vmatpush1.xpose.msra.mxu0 0.0
        %913 = vmatprep.subr.mxu0 0.0
        %914 = vmatpush1.xpose.msra.mxu0 0.0
        %915 = vmatprep.subr.mxu0 0.0
        %916 = vmatpush1.xpose.msra.mxu0 0.0
        %917 = vmatprep.subr.mxu0 0.0
        %918 = vmatpush1.xpose.msra.mxu0 0.0
        %919 = vmatprep.subr.mxu0 0.0
        %920 = vmatpush1.xpose.msra.mxu0 0.0
        %921 = vmatprep.subr.mxu0 0.0
        %922 = vmatpush1.xpose.msra.mxu0 0.0
        %923 = vmatprep.subr.mxu0 0.0
        %924 = vmatpush1.xpose.msra.mxu0 0.0
        %925 = vmatprep.subr.mxu0 0.0
        %926 = vmatpush1.xpose.msra.mxu0 0.0
        %927 = vmatprep.subr.mxu0 0.0
        %928 = vmatpush1.xpose.msra.mxu0 0.0
        %929 = vmatprep.subr.mxu0 0.0
        %930 = vmatpush1.xpose.msra.mxu0 0.0
        %931 = vmatprep.subr.mxu0 0.0
        %932 = vmatpush1.xpose.msra.mxu0 0.0
        %933 = vmatprep.subr.mxu0 0.0
        %934 = vmatpush1.xpose.msra.mxu0 0.0
        %935 = vmatprep.subr.mxu0 0.0
        %936 = vmatpush1.xpose.msra.mxu0 0.0
        %937 = vmatprep.subr.mxu0 0.0
        %938 = vmatpush1.xpose.msra.mxu0 0.0
        %939 = vmatprep.subr.mxu0 0.0
        %940 = vmatpush1.xpose.msra.mxu0 0.0
        %941 = vmatprep.mubr.f32.mxu0 0.0
        %942 = vmatmul.mubr.f32.gmra.mrb[0].mxu0 %v872
        %v943 = vpop.f32.mrb[0].mxu0
        %v944 = vadd.f32 0.0, %v943
        %v945 = vpop.f32.mrb[0].mxu0
        %946 = vdwg.mxu0
        %v947 = vsel %vm870, %v944, -inf
        %948 = vmax.xlane.f32.xlu0 %v947
        %v949 = vpop.xlane.xlu0 %948
        %v950 = vsub.f32 %v944, %v949
        %v951 = vmul.f32 %v950, 1.442695
        %v952 = vpow.pop %v951
        %v953 = vsel %vm870, %v952, 0.0
        %954 = vadd.xlane.f32.xlu0 %v953
        %v955 = vpop.xlane.xlu0 %954
        %v956 = vrcp.pop %v955
        %v957 = vmul.f32 %v952, %v956
        %v959 = vsel %vm870, %v957, 0
        %961 = vmatprep.subr.mxu0 0.0
        %962 = vmatpush1.msra.mxu0 %v860
        %963 = vmatprep.subr.mxu0 0.0
        %964 = vmatpush1.msra.mxu0 0.0
        %965 = vmatprep.subr.mxu0 0.0
        %966 = vmatpush1.msra.mxu0 0.0
        %967 = vmatprep.subr.mxu0 0.0
        %968 = vmatpush1.msra.mxu0 0.0
        %969 = vmatprep.subr.mxu0 0.0
        %970 = vmatpush1.msra.mxu0 0.0
        %971 = vmatprep.subr.mxu0 0.0
        %972 = vmatpush1.msra.mxu0 0.0
        %973 = vmatprep.subr.mxu0 0.0
        %974 = vmatpush1.msra.mxu0 0.0
        %975 = vmatprep.subr.mxu0 0.0
        %976 = vmatpush1.msra.mxu0 0.0
        %977 = vmatprep.subr.mxu0 0.0
        %978 = vmatpush1.msra.mxu0 0.0
        %979 = vmatprep.subr.mxu0 0.0
        %980 = vmatpush1.msra.mxu0 0.0
        %981 = vmatprep.subr.mxu0 0.0
        %982 = vmatpush1.msra.mxu0 0.0
        %983 = vmatprep.subr.mxu0 0.0
        %984 = vmatpush1.msra.mxu0 0.0
        %985 = vmatprep.subr.mxu0 0.0
        %986 = vmatpush1.msra.mxu0 0.0
        %987 = vmatprep.subr.mxu0 0.0
        %988 = vmatpush1.msra.mxu0 0.0
        %989 = vmatprep.subr.mxu0 0.0
        %990 = vmatpush1.msra.mxu0 0.0
        %991 = vmatprep.subr.mxu0 0.0
        %992 = vmatpush1.msra.mxu0 0.0
        %993 = vmatprep.subr.mxu0 0.0
        %994 = vmatpush1.msra.mxu0 0.0
        %995 = vmatprep.subr.mxu0 0.0
        %996 = vmatpush1.msra.mxu0 0.0
        %997 = vmatprep.subr.mxu0 0.0
        %998 = vmatpush1.msra.mxu0 0.0
        %999 = vmatprep.subr.mxu0 0.0
        %1000 = vmatpush1.msra.mxu0 0.0
        %1001 = vmatprep.subr.mxu0 0.0
        %1002 = vmatpush1.msra.mxu0 0.0
        %1003 = vmatprep.subr.mxu0 0.0
        %1004 = vmatpush1.msra.mxu0 0.0
        %1005 = vmatprep.subr.mxu0 0.0
        %1006 = vmatpush1.msra.mxu0 0.0
        %1007 = vmatprep.subr.mxu0 0.0
        %1008 = vmatpush1.msra.mxu0 0.0
        %1009 = vmatprep.subr.mxu0 0.0
        %1010 = vmatpush1.msra.mxu0 0.0
        %1011 = vmatprep.subr.mxu0 0.0
        %1012 = vmatpush1.msra.mxu0 0.0
        %1013 = vmatprep.subr.mxu0 0.0
        %1014 = vmatpush1.msra.mxu0 0.0
        %1015 = vmatprep.subr.mxu0 0.0
        %1016 = vmatpush1.msra.mxu0 0.0
        %1017 = vmatprep.subr.mxu0 0.0
        %1018 = vmatpush1.msra.mxu0 0.0
        %1019 = vmatprep.subr.mxu0 0.0
        %1020 = vmatpush1.msra.mxu0 0.0
        %1021 = vmatprep.subr.mxu0 0.0
        %1022 = vmatpush1.msra.mxu0 0.0
        %1023 = vmatprep.subr.mxu0 0.0
        %1024 = vmatpush1.msra.mxu0 0.0
        %1025 = vmatprep.mubr.f32.mxu0 0.0
        %1026 = vmatmul.mubr.f32.gmra.mrb[0].mxu0 %v959
        %v1027 = vpop.f32.mrb[0].mxu0
        %v1028 = vadd.f32 0.0, %v1027
        %v1029 = vpop.f32.mrb[0].mxu0
        %1030 = vdwg.mxu0
        %v1031 = vld [vmem:[#allocation2] sm:$0xff]
        %v1032 = vld [vmem:[%s606] sm:$0xff]
        %v1034 = vsel %vm870, %v1028, 0
        %1036 = vmatprep.subr.mxu0 0.0
        %1037 = vmatpush1.msra.mxu0 %v1032
        %1038 = vmatprep.subr.mxu0 0.0
        %1039 = vmatpush1.msra.mxu0 0.0
        %1040 = vmatprep.subr.mxu0 0.0
        %1041 = vmatpush1.msra.mxu0 0.0
        %1042 = vmatprep.subr.mxu0 0.0
        %1043 = vmatpush1.msra.mxu0 0.0
        %1044 = vmatprep.subr.mxu0 0.0
        %1045 = vmatpush1.msra.mxu0 0.0
        %1046 = vmatprep.subr.mxu0 0.0
        %1047 = vmatpush1.msra.mxu0 0.0
        %1048 = vmatprep.subr.mxu0 0.0
        %1049 = vmatpush1.msra.mxu0 0.0
        %1050 = vmatprep.subr.mxu0 0.0
        %1051 = vmatpush1.msra.mxu0 0.0
        %1052 = vmatprep.subr.mxu0 0.0
        %1053 = vmatpush1.msra.mxu0 0.0
        %1054 = vmatprep.subr.mxu0 0.0
        %1055 = vmatpush1.msra.mxu0 0.0
        %1056 = vmatprep.subr.mxu0 0.0
        %1057 = vmatpush1.msra.mxu0 0.0
        %1058 = vmatprep.subr.mxu0 0.0
        %1059 = vmatpush1.msra.mxu0 0.0
        %1060 = vmatprep.subr.mxu0 0.0
        %1061 = vmatpush1.msra.mxu0 0.0
        %1062 = vmatprep.subr.mxu0 0.0
        %1063 = vmatpush1.msra.mxu0 0.0
        %1064 = vmatprep.subr.mxu0 0.0
        %1065 = vmatpush1.msra.mxu0 0.0
        %1066 = vmatprep.subr.mxu0 0.0
        %1067 = vmatpush1.msra.mxu0 0.0
        %1068 = vmatprep.subr.mxu0 0.0
        %1069 = vmatpush1.msra.mxu0 0.0
        %1070 = vmatprep.subr.mxu0 0.0
        %1071 = vmatpush1.msra.mxu0 0.0
        %1072 = vmatprep.subr.mxu0 0.0
        %1073 = vmatpush1.msra.mxu0 0.0
        %1074 = vmatprep.subr.mxu0 0.0
        %1075 = vmatpush1.msra.mxu0 0.0
        %1076 = vmatprep.subr.mxu0 0.0
        %1077 = vmatpush1.msra.mxu0 0.0
        %1078 = vmatprep.subr.mxu0 0.0
        %1079 = vmatpush1.msra.mxu0 0.0
        %1080 = vmatprep.subr.mxu0 0.0
        %1081 = vmatpush1.msra.mxu0 0.0
        %1082 = vmatprep.subr.mxu0 0.0
        %1083 = vmatpush1.msra.mxu0 0.0
        %1084 = vmatprep.subr.mxu0 0.0
        %1085 = vmatpush1.msra.mxu0 0.0
        %1086 = vmatprep.subr.mxu0 0.0
        %1087 = vmatpush1.msra.mxu0 0.0
        %1088 = vmatprep.subr.mxu0 0.0
        %1089 = vmatpush1.msra.mxu0 0.0
        %1090 = vmatprep.subr.mxu0 0.0
        %1091 = vmatpush1.msra.mxu0 0.0
        %1092 = vmatprep.subr.mxu0 0.0
        %1093 = vmatpush1.msra.mxu0 0.0
        %1094 = vmatprep.subr.mxu0 0.0
        %1095 = vmatpush1.msra.mxu0 0.0
        %1096 = vmatprep.subr.mxu0 0.0
        %1097 = vmatpush1.msra.mxu0 0.0
        %1098 = vmatprep.subr.mxu0 0.0
        %1099 = vmatpush1.msra.mxu0 0.0
        %1100 = vmatprep.mubr.f32.mxu0 0.0
        %1101 = vmatmul.mubr.f32.gmra.mrb[0].mxu0 %v1034
        %v1102 = vpop.f32.mrb[0].mxu0
        %v1103 = vadd.f32 0.0, %v1102
        %v1104 = vpop.f32.mrb[0].mxu0
        %1105 = vdwg.mxu0
        %v1106 = vadd.f32 %v1031, %v1103
        %1107 = vst.msk [vmem:[#allocation2] sm:$0xff] %vm619, %v1106
        %v1108 = vld [vmem:[%s563] sm:$0xff]
        %v1109 = vadd.f32 %v1108, %v957
        %1110 = vst.msk [vmem:[%s563] sm:$0xff] %vm870, %v1109
        %p1111 = scmp.eq.s32.totalorder %s37, 3
        // Predicated region
        $region69: #{tpu_custom_call.1} parent=63 // pred_check
          %p1112 = pneg %p1111
        $region70: #{tpu_custom_call.1} parent=63 // pred_check_branch
          %1114 = sbr.rel (%p1112) target = $region72
        $region71: #{tpu_custom_call.1} parent=63 // pred_region
          %v1115 = vld [vmem:[#allocation2] sm:$0xff]
          %v1116 = vld [vmem:[%s10] sm:$0x1]
          %v1118 = vlaneseq
          %v1119 = vshrl.u32 %v1118, 7
          %v1120 = vsub.s32 0, %v1119
          %v1121 = vrot.slane %v1116, %v1120
          %v1123 = vadd.f32 %v1115, %v1121
          %1124 = vst.msk [vmem:[%s556] sm:$0xff] %vm619, %v1123
          %v1125 = vld [vmem:[%s563] sm:$0xff]
          %v1126 = vmul.f32 %v1125, 0.25
          %1127 = vst.msk [vmem:[%s563] sm:$0xff] %vm870, %v1126
        $region72: #{tpu_custom_call.1} parent=63 // pred_fallthru
          _
        %s1128 = sand.u32 %s342, 1
        %s1129 = scalar_lea.sflag [#allocation4], %s1128
        %s1130 = sand.u32 %s342, 1
        %s1131 = smul.addr %s1130, 8
        %s1132 = scalar_lea.vmem [#allocation3], %s1131
        %s1133 = sand.u32 %s370, 1
        %s1134 = scalar_lea.sflag [#allocation6], %s1133
        %s1135 = sand.u32 %s370, 1
        %s1136 = smul.addr %s1135, 8
        %s1137 = scalar_lea.vmem [#allocation5], %s1136
        // Predicated region
        $region73: #{tpu_custom_call.1} parent=63 // pred_check
          %p1138 = pneg %p352
        $region74: #{tpu_custom_call.1} parent=63 // pred_check_branch
          %1140 = sbr.rel (%p1138) target = $region76
        $region75: #{tpu_custom_call.1} parent=63 // pred_region
          %s1142 = ssub.s32 128, 128
          %1143 = vsyncadd %s1129, %s1142
          %s1144 = sadd.s32 %s36, %s35
          %s1145 = smul.addr %s1144, 128
          %s1146 = scalar_lea.hbm %s11, %s1145
          %s1148 = sshll.u32 %s1132, 4
          %s1149 = int_to_ptr.vmem [resolvable:$true] %s1148
          %1151 = dma.vmem_to_hbm [thread:$0]  %s1149, 128, %s1146, %s1129
        $region76: #{tpu_custom_call.1} parent=63 // pred_fallthru
          _
        // Predicated region
        $region77: #{tpu_custom_call.1} parent=63 // pred_check
          %p1152 = pneg %p380
        $region78: #{tpu_custom_call.1} parent=63 // pred_check_branch
          %1154 = sbr.rel (%p1152) target = $region80
        $region79: #{tpu_custom_call.1} parent=63 // pred_region
          %s1156 = ssub.s32 128, 128
          %1157 = vsyncadd %s1134, %s1156
          %s1158 = sadd.s32 %s36, %s35
          %s1159 = smul.addr %s1158, 128
          %s1160 = scalar_lea.hbm %s12, %s1159
          %s1162 = sshll.u32 %s1137, 4
          %s1163 = int_to_ptr.vmem [resolvable:$true] %s1162
          %1165 = dma.vmem_to_hbm [thread:$0]  %s1163, 128, %s1160, %s1134
        $region80: #{tpu_custom_call.1} parent=63 // pred_fallthru
          _
      $region64: #{tpu_custom_call.1} parent=5 // pred_fallthru
        _
      %p1166 = scmp.le.s32.totalorder 2, %s25
      // Predicated region
      $region81: #{tpu_custom_call.1} parent=5 // pred_check
        %p1167 = pneg %p1166
      $region82: #{tpu_custom_call.1} parent=5 // pred_check_branch
        %1169 = sbr.rel (%p1167) target = $region84
      $region83: #{tpu_custom_call.1} parent=5 // pred_region
        %s1170 = ssub.s32 %s25, 2
        // Predicated region
        $region85: #{tpu_custom_call.1} parent=83 // pred_check
          %p1171 = pneg %p358
        $region86: #{tpu_custom_call.1} parent=83 // pred_check_branch
          %1173 = sbr.rel (%p1171) target = $region88
        $region87: #{tpu_custom_call.1} parent=83 // pred_region
          %s1174 = sand.u32 %s343, 1
          %s1175 = scalar_lea.sflag [#allocation4], %s1174
          %s1176 = sand.u32 %s343, 1
          %s1177 = smul.addr %s1176, 8
          %s1178 = scalar_lea.vmem [#allocation3], %s1177
          %1179 = dma.done %s1175, 128
        $region88: #{tpu_custom_call.1} parent=83 // pred_fallthru
          _
        // Predicated region
        $region89: #{tpu_custom_call.1} parent=83 // pred_check
          %p1180 = pneg %p386
        $region90: #{tpu_custom_call.1} parent=83 // pred_check_branch
          %1182 = sbr.rel (%p1180) target = $region92
        $region91: #{tpu_custom_call.1} parent=83 // pred_region
          %s1183 = sand.u32 %s371, 1
          %s1184 = scalar_lea.sflag [#allocation6], %s1183
          %s1185 = sand.u32 %s371, 1
          %s1186 = smul.addr %s1185, 8
          %s1187 = scalar_lea.vmem [#allocation5], %s1186
          %1188 = dma.done %s1184, 128
        $region92: #{tpu_custom_call.1} parent=83 // pred_fallthru
          _
      $region84: #{tpu_custom_call.1} parent=5 // pred_fallthru
        _
    $region6: #{tpu_custom_call.1} parent=1 // loop_footer
      %s29 = sadd.s32 1, %s25
    $region7: #{tpu_custom_call.1} parent=1 // loop_footer_branch
      %24 = sbr.rel target = $region3
    $region8: #{tpu_custom_call.1} parent=1 // loop_exit
      _
    %1189 = vsyncpa [#allocation4], 1
    %s1190 = scalar_lea.sflag [#allocation4], 1
    %1191 = vsyncpa %s1190, 1
    %1192 = vsyncpa [#allocation6], 1
    %s1193 = scalar_lea.sflag [#allocation6], 1
    %1194 = vsyncpa %s1193, 1

</llo_original>
